<compile_context>
chip_gen: v7x
topology: tpu7x:2x2x1
jax: 0.10.0
libtpu: 0.0.40
codegen_flags: <defaults>
</compile_context>

<pallas_src>
import functools

import jax
import jax.numpy as jnp
from jax.experimental import pallas as pl
from jax.experimental.pallas import tpu as pltpu

BN_EPS = 1e-5
IN_PAD = 128      # 45 input features, padded lane-dense
OUT_PAD = 128     # 6 output classes, padded lane-dense
NEG_BIG = -1e30   # padded logit bias -> exp() underflows to 0


def fnn_kernel(
    x_ref,
    w1_ref, b1_ref,
    w2_ref, b2_ref,
    w3_ref, b3_ref,
    w4_ref, b4_ref,
    out_ref,
):
    """One batch tile [TM, 128] -> softmax probabilities [TM, 128] (lane-padded)."""
    wdt = w1_ref.dtype  # f32 or bf16 matmul operands; accumulation is always f32

    # Layer 1: Linear(128pad -> 256) [BN1 folded in] -> ReLU
    h = jnp.dot(x_ref[...].astype(wdt), w1_ref[...],
                preferred_element_type=jnp.float32) + b1_ref[...]
    h = jnp.maximum(h, 0.0)                                          # [TM, 256] f32

    # Layer 2: Linear(256 -> 128) [BN2 folded in] -> ReLU
    h = jnp.dot(h.astype(wdt), w2_ref[...],
                preferred_element_type=jnp.float32) + b2_ref[...]
    h = jnp.maximum(h, 0.0)                                          # [TM, 128] f32

    # Layer 3: Linear(128 -> 64) -> ReLU
    h = jnp.dot(h.astype(wdt), w3_ref[...],
                preferred_element_type=jnp.float32) + b3_ref[...]
    h = jnp.maximum(h, 0.0)                                          # [TM, 64] f32

    # Output: Linear(64 -> 128pad) -> Softmax over the lane axis.
    # Padded columns carry bias = -1e30, so exp() -> 0 and they do not perturb
    # the max or the denominator.
    logits = jnp.dot(h.astype(wdt), w4_ref[...],
                     preferred_element_type=jnp.float32) + b4_ref[...]
    z = logits - jnp.max(logits, axis=1, keepdims=True)
    ez = jnp.exp(z)
    denom = jnp.sum(ez, axis=1, keepdims=True)
    out_ref[...] = ez * pl.reciprocal(denom, approx=True)            # [TM, 128]


def _fold_and_pad_params(params, weight_dtype):
    """Fold inference-mode BatchNorm into the Linear layers and pad to
    lane-dense shapes.  Returns the 8 arrays the kernel consumes."""
    f32 = jnp.float32

    # --- layer 1: Linear(45,256) + BN(256) folded, input padded 45 -> 128 ---
    s1 = params["g1"] * jax.lax.rsqrt(params["rv1"] + BN_EPS)        # [1,256]
    w1 = params["w1"] * s1                                           # [45,256]
    b1 = (params["b1"] - params["rm1"]) * s1 + params["be1"]         # [1,256]
    w1 = jnp.pad(w1, ((0, IN_PAD - w1.shape[0]), (0, 0)))            # [128,256]

    # --- layer 2: Linear(256,128) + BN(128) folded ---
    s2 = params["g2"] * jax.lax.rsqrt(params["rv2"] + BN_EPS)        # [1,128]
    w2 = params["w2"] * s2                                           # [256,128]
    b2 = (params["b2"] - params["rm2"]) * s2 + params["be2"]         # [1,128]

    # --- layer 3: Linear(128,64) ---
    w3, b3 = params["w3"], params["b3"]

    # --- output: Linear(64,6) padded to 128 lane-dense columns ---
    w4 = jnp.pad(params["w4"], ((0, 0), (0, OUT_PAD - 6)))           # [64,128]
    b4 = jnp.pad(params["b4"], ((0, 0), (0, OUT_PAD - 6)),
                 constant_values=NEG_BIG)                            # [1,128]

    wdt = weight_dtype
    return (
        w1.astype(wdt), b1.astype(f32),
        w2.astype(wdt), b2.astype(f32),
        w3.astype(wdt), b3.astype(f32),
        w4.astype(wdt), b4.astype(f32),
    )


@functools.partial(jax.jit, static_argnames=("tm", "weight_dtype"))
def fnn_forward(x, params, *, tm=256, weight_dtype=jnp.float32):
    """Forward pass of FNN.  x: [B, 45] f32 -> probabilities [B, 6] f32."""
    B = x.shape[0]
    (w1, b1, w2, b2, w3, b3, w4, b4) = _fold_and_pad_params(params, weight_dtype)

    # Effective batch tile: shrink for small batches (8-aligned sublanes) so a
    # tiny batch doesn't pay for a full 256-row tile; cap at `tm`.
    tm_eff = min(tm, max(8, pl.cdiv(B, 8) * 8))

    # Pad batch to a multiple of the tile and features to 128 lanes.
    nb = pl.cdiv(B, tm_eff)
    b_pad = nb * tm_eff
    x_pad = jnp.pad(x, ((0, b_pad - B), (0, IN_PAD - x.shape[1])))   # [b_pad,128]

    const = lambda i: (0, 0)   # weights/biases: VMEM-resident, never re-fetched
    out_pad = pl.pallas_call(
        fnn_kernel,
        out_shape=jax.ShapeDtypeStruct((b_pad, OUT_PAD), jnp.float32),
        grid=(nb,),
        in_specs=[
            pl.BlockSpec((tm_eff, IN_PAD), lambda i: (i, 0)),        # x tile
            pl.BlockSpec(w1.shape, const), pl.BlockSpec(b1.shape, const),
            pl.BlockSpec(w2.shape, const), pl.BlockSpec(b2.shape, const),
            pl.BlockSpec(w3.shape, const), pl.BlockSpec(b3.shape, const),
            pl.BlockSpec(w4.shape, const), pl.BlockSpec(b4.shape, const),
        ],
        out_specs=pl.BlockSpec((tm_eff, OUT_PAD), lambda i: (i, 0)),
        compiler_params=pltpu.CompilerParams(
            dimension_semantics=("parallel",),       # megacore-shard batch axis
            vmem_limit_bytes=32 * 1024 * 1024,
        ),
    )(x_pad, w1, b1, w2, b2, w3, b3, w4, b4)

    return out_pad[:B, :6]


def init_params(key):
    """Deterministic parameter init mimicking PyTorch nn.Linear defaults
    (uniform +/- 1/sqrt(fan_in)); BatchNorm with gamma=1, beta=0,
    running_mean=0, running_var=1 (fresh module, eval mode)."""
    dims = [(45, 256), (256, 128), (128, 64), (64, 6)]
    keys = jax.random.split(key, 2 * len(dims))
    p = {}
    for i, (fin, fout) in enumerate(dims, start=1):
        bound = 1.0 / (fin ** 0.5)
        wkey, bkey = keys[2 * (i - 1)], keys[2 * (i - 1) + 1]
        p[f"w{i}"] = jax.random.uniform(wkey, (fin, fout), jnp.float32, -bound, bound)
        p[f"b{i}"] = jax.random.uniform(bkey, (1, fout), jnp.float32, -bound, bound)
    for i, n in [(1, 256), (2, 128)]:
        p[f"g{i}"] = jnp.ones((1, n), jnp.float32)
        p[f"be{i}"] = jnp.zeros((1, n), jnp.float32)
        p[f"rm{i}"] = jnp.zeros((1, n), jnp.float32)
        p[f"rv{i}"] = jnp.ones((1, n), jnp.float32)
    return p


def fnn_reference(x, p):
    """Pure-JAX reference (unfused BN, exact divide) for correctness checking."""
    h = x @ p["w1"] + p["b1"]
    h = (h - p["rm1"]) / jnp.sqrt(p["rv1"] + BN_EPS) * p["g1"] + p["be1"]
    h = jnp.maximum(h, 0.0)
    h = h @ p["w2"] + p["b2"]
    h = (h - p["rm2"]) / jnp.sqrt(p["rv2"] + BN_EPS) * p["g2"] + p["be2"]
    h = jnp.maximum(h, 0.0)
    h = jnp.maximum(h @ p["w3"] + p["b3"], 0.0)
    logits = h @ p["w4"] + p["b4"]
    return jax.nn.softmax(logits, axis=1)


if __name__ == "__main__":
    key = jax.random.PRNGKey(0)
    pkey, xkey = jax.random.split(key)
    params = init_params(pkey)

    # Non-multiple-of-tile batch to exercise padding + a multi-step grid.
    B = 300
    x = jax.random.normal(xkey, (B, 45), jnp.float32)

    ref = fnn_reference(x, params)

    # f32 matmul operands (default; v5e-friendly).
    out = jax.block_until_ready(fnn_forward(x, params))
    assert out.shape == (B, 6)
    assert jnp.all(jnp.isfinite(out))
    # approx=True reciprocal has ~1e-4 relative error; keep checks meaningful.
    assert jnp.allclose(out, ref, atol=2e-3, rtol=2e-3), "f32 mismatch vs reference"
    assert jnp.allclose(jnp.sum(out, axis=1), jnp.ones((B,)), atol=2e-3)

    # Small-batch path (single shrunken tile).
    x_small = x[:20]
    out_small = jax.block_until_ready(fnn_forward(x_small, params))
    assert out_small.shape == (20, 6)
    assert jnp.allclose(out_small, ref[:20], atol=2e-3, rtol=2e-3), "small-batch mismatch"

    # bf16 matmul operands with f32 accumulation (v6e/v7x MXU fast path).
    out_bf16 = jax.block_until_ready(
        fnn_forward(x, params, weight_dtype=jnp.bfloat16))
    assert out_bf16.shape == (B, 6)
    assert jnp.allclose(out_bf16, ref, atol=5e-2), "bf16 mismatch vs reference"

    print("KERNEL_OK")
</pallas_src>

<mosaic_0001>
module attributes {stable_mosaic.version = 11 : i64} {
  func.func @fnn_kernel(%arg0: i32, %arg1: memref<256x128xf32, #tpu.memory_space<vmem>>, %arg2: memref<128x256xf32, #tpu.memory_space<vmem>>, %arg3: memref<1x256xf32, #tpu.memory_space<vmem>>, %arg4: memref<256x128xf32, #tpu.memory_space<vmem>>, %arg5: memref<1x128xf32, #tpu.memory_space<vmem>>, %arg6: memref<128x64xf32, #tpu.memory_space<vmem>>, %arg7: memref<1x64xf32, #tpu.memory_space<vmem>>, %arg8: memref<64x128xf32, #tpu.memory_space<vmem>>, %arg9: memref<1x128xf32, #tpu.memory_space<vmem>>, %arg10: memref<256x128xf32, #tpu.memory_space<vmem>>) attributes {dimension_semantics = [#tpu.dimension_semantics<parallel>], iteration_bounds = array<i64: 2>, scalar_prefetch = 0 : i64, scratch_operands = 0 : i64, tpu.core_type = #tpu.core_type<tc>, window_params = [{transform_indices = @transform_0, window_bounds = array<i64: 256, 128>}, {pipeline_mode = #tpu.pipeline_mode<synchronous>, transform_indices = @transform_1, window_bounds = array<i64: 128, 256>}, {pipeline_mode = #tpu.pipeline_mode<synchronous>, transform_indices = @transform_2, window_bounds = array<i64: 1, 256>}, {pipeline_mode = #tpu.pipeline_mode<synchronous>, transform_indices = @transform_3, window_bounds = array<i64: 256, 128>}, {pipeline_mode = #tpu.pipeline_mode<synchronous>, transform_indices = @transform_4, window_bounds = array<i64: 1, 128>}, {pipeline_mode = #tpu.pipeline_mode<synchronous>, transform_indices = @transform_5, window_bounds = array<i64: 128, 64>}, {pipeline_mode = #tpu.pipeline_mode<synchronous>, transform_indices = @transform_6, window_bounds = array<i64: 1, 64>}, {pipeline_mode = #tpu.pipeline_mode<synchronous>, transform_indices = @transform_7, window_bounds = array<i64: 64, 128>}, {pipeline_mode = #tpu.pipeline_mode<synchronous>, transform_indices = @transform_8, window_bounds = array<i64: 1, 128>}, {transform_indices = @transform_9, window_bounds = array<i64: 256, 128>}]} {
    %c0 = arith.constant 0 : index
    %c0_0 = arith.constant 0 : index
    %0 = vector.load %arg1[%c0, %c0_0] : memref<256x128xf32, #tpu.memory_space<vmem>>, vector<256x128xf32>
    %c0_1 = arith.constant 0 : index
    %c0_2 = arith.constant 0 : index
    %1 = vector.load %arg2[%c0_1, %c0_2] : memref<128x256xf32, #tpu.memory_space<vmem>>, vector<128x256xf32>
    %cst = arith.constant dense<0.000000e+00> : vector<256x256xf32>
    %2 = tpu.matmul %0, %1, %cst {dimension_numbers = #tpu.dot_dimension_numbers<[1], [0], [0], [1], [0, 0, 1, 1], [], []>} : vector<256x128xf32>, vector<128x256xf32>, vector<256x256xf32> -> vector<256x256xf32>
    %c0_3 = arith.constant 0 : index
    %c0_4 = arith.constant 0 : index
    %3 = vector.load %arg3[%c0_3, %c0_4] : memref<1x256xf32, #tpu.memory_space<vmem>>, vector<1x256xf32>
    %4 = vector.broadcast %3 : vector<1x256xf32> to vector<256x256xf32>
    %5 = arith.addf %2, %4 : vector<256x256xf32>
    %cst_5 = arith.constant 0.000000e+00 : f32
    %6 = vector.broadcast %cst_5 : f32 to vector<256x256xf32>
    %7 = arith.maximumf %5, %6 : vector<256x256xf32>
    %c0_6 = arith.constant 0 : index
    %c0_7 = arith.constant 0 : index
    %8 = vector.load %arg4[%c0_6, %c0_7] : memref<256x128xf32, #tpu.memory_space<vmem>>, vector<256x128xf32>
    %cst_8 = arith.constant dense<0.000000e+00> : vector<256x128xf32>
    %9 = tpu.matmul %7, %8, %cst_8 {dimension_numbers = #tpu.dot_dimension_numbers<[1], [0], [0], [1], [0, 0, 1, 1], [], []>} : vector<256x256xf32>, vector<256x128xf32>, vector<256x128xf32> -> vector<256x128xf32>
    %c0_9 = arith.constant 0 : index
    %c0_10 = arith.constant 0 : index
    %10 = vector.load %arg5[%c0_9, %c0_10] : memref<1x128xf32, #tpu.memory_space<vmem>>, vector<1x128xf32>
    %11 = vector.broadcast %10 : vector<1x128xf32> to vector<256x128xf32>
    %12 = arith.addf %9, %11 : vector<256x128xf32>
    %cst_11 = arith.constant 0.000000e+00 : f32
    %13 = vector.broadcast %cst_11 : f32 to vector<256x128xf32>
    %14 = arith.maximumf %12, %13 : vector<256x128xf32>
    %c0_12 = arith.constant 0 : index
    %c0_13 = arith.constant 0 : index
    %15 = vector.load %arg6[%c0_12, %c0_13] : memref<128x64xf32, #tpu.memory_space<vmem>>, vector<128x64xf32>
    %cst_14 = arith.constant dense<0.000000e+00> : vector<256x64xf32>
    %16 = tpu.matmul %14, %15, %cst_14 {dimension_numbers = #tpu.dot_dimension_numbers<[1], [0], [0], [1], [0, 0, 1, 1], [], []>} : vector<256x128xf32>, vector<128x64xf32>, vector<256x64xf32> -> vector<256x64xf32>
    %c0_15 = arith.constant 0 : index
    %c0_16 = arith.constant 0 : index
    %17 = vector.load %arg7[%c0_15, %c0_16] : memref<1x64xf32, #tpu.memory_space<vmem>>, vector<1x64xf32>
    %18 = vector.broadcast %17 : vector<1x64xf32> to vector<256x64xf32>
    %19 = arith.addf %16, %18 : vector<256x64xf32>
    %cst_17 = arith.constant 0.000000e+00 : f32
    %20 = vector.broadcast %cst_17 : f32 to vector<256x64xf32>
    %21 = arith.maximumf %19, %20 : vector<256x64xf32>
    %c0_18 = arith.constant 0 : index
    %c0_19 = arith.constant 0 : index
    %22 = vector.load %arg8[%c0_18, %c0_19] : memref<64x128xf32, #tpu.memory_space<vmem>>, vector<64x128xf32>
    %cst_20 = arith.constant dense<0.000000e+00> : vector<256x128xf32>
    %23 = tpu.matmul %21, %22, %cst_20 {dimension_numbers = #tpu.dot_dimension_numbers<[1], [0], [0], [1], [0, 0, 1, 1], [], []>} : vector<256x64xf32>, vector<64x128xf32>, vector<256x128xf32> -> vector<256x128xf32>
    %c0_21 = arith.constant 0 : index
    %c0_22 = arith.constant 0 : index
    %24 = vector.load %arg9[%c0_21, %c0_22] : memref<1x128xf32, #tpu.memory_space<vmem>>, vector<1x128xf32>
    %25 = vector.broadcast %24 : vector<1x128xf32> to vector<256x128xf32>
    %26 = arith.addf %23, %25 : vector<256x128xf32>
    %cst_23 = arith.constant dense<0xFF800000> : vector<256xf32>
    %27 = vector.multi_reduction <maximumf>, %26, %cst_23 [1] : vector<256x128xf32> to vector<256xf32>
    %28 = vector.shape_cast %27 : vector<256xf32> to vector<256x1xf32>
    %29 = vector.broadcast %28 : vector<256x1xf32> to vector<256x128xf32>
    %30 = arith.subf %26, %29 : vector<256x128xf32>
    %31 = math.exp %30 : vector<256x128xf32>
    %cst_24 = arith.constant dense<0.000000e+00> : vector<256xf32>
    %32 = vector.multi_reduction <add>, %31, %cst_24 [1] : vector<256x128xf32> to vector<256xf32>
    %33 = vector.shape_cast %32 : vector<256xf32> to vector<256x1xf32>
    %34 = tpu.reciprocal %33 {approx = true} : vector<256x1xf32> -> vector<256x1xf32>
    %35 = vector.broadcast %34 : vector<256x1xf32> to vector<256x128xf32>
    %36 = arith.mulf %31, %35 : vector<256x128xf32>
    %c0_25 = arith.constant 0 : index
    %c0_26 = arith.constant 0 : index
    %37 = vector.load %arg10[%c0_25, %c0_26] : memref<256x128xf32, #tpu.memory_space<vmem>>, vector<256x128xf32>
    tpu.vector_store %arg10[%c0_25, %c0_26], %36 {strides = array<i32>} : memref<256x128xf32, #tpu.memory_space<vmem>>, vector<256x128xf32>,
    return
  }
  func.func @transform_0(%arg0: i32) -> (i32, i32) {
    %c0_i32 = arith.constant 0 : i32
    %c0_i32_0 = arith.constant 0 : i32
    return %arg0, %c0_i32 : i32, i32
  }
  func.func @transform_1(%arg0: i32) -> (i32, i32) {
    %c0_i32 = arith.constant 0 : i32
    %c0_i32_0 = arith.constant 0 : i32
    %c0_i32_1 = arith.constant 0 : i32
    return %c0_i32, %c0_i32_0 : i32, i32
  }
  func.func @transform_2(%arg0: i32) -> (i32, i32) {
    %c0_i32 = arith.constant 0 : i32
    %c0_i32_0 = arith.constant 0 : i32
    %c0_i32_1 = arith.constant 0 : i32
    return %c0_i32, %c0_i32_0 : i32, i32
  }
  func.func @transform_3(%arg0: i32) -> (i32, i32) {
    %c0_i32 = arith.constant 0 : i32
    %c0_i32_0 = arith.constant 0 : i32
    %c0_i32_1 = arith.constant 0 : i32
    return %c0_i32, %c0_i32_0 : i32, i32
  }
  func.func @transform_4(%arg0: i32) -> (i32, i32) {
    %c0_i32 = arith.constant 0 : i32
    %c0_i32_0 = arith.constant 0 : i32
    %c0_i32_1 = arith.constant 0 : i32
    return %c0_i32, %c0_i32_0 : i32, i32
  }
  func.func @transform_5(%arg0: i32) -> (i32, i32) {
    %c0_i32 = arith.constant 0 : i32
    %c0_i32_0 = arith.constant 0 : i32
    %c0_i32_1 = arith.constant 0 : i32
    return %c0_i32, %c0_i32_0 : i32, i32
  }
  func.func @transform_6(%arg0: i32) -> (i32, i32) {
    %c0_i32 = arith.constant 0 : i32
    %c0_i32_0 = arith.constant 0 : i32
    %c0_i32_1 = arith.constant 0 : i32
    return %c0_i32, %c0_i32_0 : i32, i32
  }
  func.func @transform_7(%arg0: i32) -> (i32, i32) {
    %c0_i32 = arith.constant 0 : i32
    %c0_i32_0 = arith.constant 0 : i32
    %c0_i32_1 = arith.constant 0 : i32
    return %c0_i32, %c0_i32_0 : i32, i32
  }
  func.func @transform_8(%arg0: i32) -> (i32, i32) {
    %c0_i32 = arith.constant 0 : i32
    %c0_i32_0 = arith.constant 0 : i32
    %c0_i32_1 = arith.constant 0 : i32
    return %c0_i32, %c0_i32_0 : i32, i32
  }
  func.func @transform_9(%arg0: i32) -> (i32, i32) {
    %c0_i32 = arith.constant 0 : i32
    %c0_i32_0 = arith.constant 0 : i32
    return %arg0, %c0_i32 : i32, i32
  }
}

</mosaic_0001>

<llo_original>
// kernel: fnn_forward.1
$region0: #{fnn_forward.1}
  #allocation0 [shape = 'u32[]', space=smem, size = 0x4, offset = 0x4, fixed_abs, tag = 'smem constant byte address 0x4 - core index']
  #allocation1 [shape = 'u32[144,128]{1,0:T(1,128)}', space=vmem, size = 0x12000, scoped, tag = 'internal scratch']
  %s0 = inlined_call_operand.vmem [shape: f32[512,128], index: 0, kind: input, shape index: {}]
  %s1 = inlined_call_operand.vmem [shape: f32[128,256], index: 1, kind: input, shape index: {}]
  %s2 = inlined_call_operand.vmem [shape: f32[1,256], index: 2, kind: input, shape index: {}]
  %s3 = inlined_call_operand.vmem [shape: f32[256,128], index: 3, kind: input, shape index: {}]
  %s4 = inlined_call_operand.vmem [shape: f32[1,128], index: 4, kind: input, shape index: {}]
  %s5 = inlined_call_operand.vmem [shape: f32[128,64], index: 5, kind: input, shape index: {}]
  %s6 = inlined_call_operand.vmem [shape: f32[1,64], index: 6, kind: input, shape index: {}]
  %s7 = inlined_call_operand.vmem [shape: f32[64,128], index: 7, kind: input, shape index: {}]
  %s8 = inlined_call_operand.vmem [shape: f32[1,128], index: 8, kind: input, shape index: {}]
  %s9 = inlined_call_operand.vmem [shape: f32[512,128], index: 9, kind: output, shape index: {}]
  %s10 = sld [smem:[#allocation0]]
  $region69: #{fnn_forward.1} parent=0
    _
  %s12 = ssub.s32 1, %s10
  %s13 = scalar_select 0, %s12, %s10
  loop: start=0, step=1, limit=4
  $region2: #{fnn_forward.1} parent=0 // loop_pre_header
    _
  $region3: #{fnn_forward.1} parent=0 // loop_header
    %s15 = sphi 0, %s19
    %p16 = scmp.ge.s32.totalorder %s15, 4
    %s25 = sphi 0, %s27
    %s28 = sphi 0, %s25
    %s29 = sphi 0, %s28
    %s45 = sphi 0, %s29
    %s49 = sphi 0, %s49
    %s51 = sphi 0, %s49
    %s52 = sphi 0, %s51
    %s66 = sphi 0, %s52
    %s70 = sphi 0, %s70
    %s72 = sphi 0, %s70
    %s73 = sphi 0, %s72
    %s87 = sphi 0, %s73
    %s91 = sphi 0, %s91
    %s93 = sphi 0, %s91
    %s94 = sphi 0, %s93
    %s108 = sphi 0, %s94
    %s112 = sphi 0, %s112
    %s114 = sphi 0, %s112
    %s115 = sphi 0, %s114
    %s129 = sphi 0, %s115
    %s133 = sphi 0, %s133
    %s135 = sphi 0, %s133
    %s136 = sphi 0, %s135
    %s150 = sphi 0, %s136
    %s154 = sphi 0, %s154
    %s156 = sphi 0, %s154
    %s157 = sphi 0, %s156
    %s171 = sphi 0, %s157
    %s175 = sphi 0, %s175
    %s177 = sphi 0, %s175
    %s178 = sphi 0, %s177
    %s192 = sphi 0, %s178
    %s196 = sphi 0, %s196
    %s198 = sphi 0, %s196
    %s199 = sphi 0, %s198
    %s213 = sphi 0, %s199
    %s219 = sphi 0, %s221
    %s222 = sphi 0, %s219
    %s223 = sphi 0, %s222
    %s239 = sphi 0, %s223
  $region4: #{fnn_forward.1} parent=0 // loop_header_branch
    %18 = sbr.rel (%p16) target = $region8
  $region5: #{fnn_forward.1} parent=0 // loop_body
    %s20 = ssub.s32 %s15, 1
    %s21 = ssub.s32 %s15, 2
    %s22 = sadd.s32 %s15, 1
    %s23 = ssub.s32 %s15, %s22
    %p24 = scmp.eq.s32.totalorder %s23, 0
    %s26 = sadd.s32 %s25, 1
    %s27 = scalar_select %p24, %s25, %s26
    %p30 = pneg %p24
    %p31 = scmp.eq.s32.totalorder %s15, 1
    %p32 = por %p30, %p31
    %p33 = scmp.ne.s32.totalorder %s25, %s28
    %p34 = scmp.eq.s32.totalorder %s15, 0
    %p35 = por %p33, %p34
    %p36 = scmp.ne.s32.totalorder %s25, %s28
    %p37 = scmp.eq.s32.totalorder %s20, 1
    %p38 = por %p36, %p37
    %p39 = scmp.ne.s32.totalorder %s28, %s29
    %p40 = scmp.eq.s32.totalorder %s20, 0
    %p41 = por %p39, %p40
    %p42 = scmp.ne.s32.totalorder %s28, %s29
    %p43 = scmp.eq.s32.totalorder %s21, 1
    %p44 = por %p42, %p43
    %p46 = scmp.ne.s32.totalorder %s29, %s45
    %p47 = scmp.eq.s32.totalorder %s21, 0
    %p48 = por %p46, %p47
    %s50 = sadd.s32 %s49, 1
    %p53 = scmp.eq.s32.totalorder %s15, 1
    %p54 = scmp.ne.s32.totalorder %s49, %s51
    %p55 = scmp.eq.s32.totalorder %s15, 0
    %p56 = por %p54, %p55
    %p57 = scmp.ne.s32.totalorder %s49, %s51
    %p58 = scmp.eq.s32.totalorder %s20, 1
    %p59 = por %p57, %p58
    %p60 = scmp.ne.s32.totalorder %s51, %s52
    %p61 = scmp.eq.s32.totalorder %s20, 0
    %p62 = por %p60, %p61
    %p63 = scmp.ne.s32.totalorder %s51, %s52
    %p64 = scmp.eq.s32.totalorder %s21, 1
    %p65 = por %p63, %p64
    %p67 = scmp.ne.s32.totalorder %s52, %s66
    %p68 = scmp.eq.s32.totalorder %s21, 0
    %p69 = por %p67, %p68
    %s71 = sadd.s32 %s70, 1
    %p74 = scmp.eq.s32.totalorder %s15, 1
    %p75 = scmp.ne.s32.totalorder %s70, %s72
    %p76 = scmp.eq.s32.totalorder %s15, 0
    %p77 = por %p75, %p76
    %p78 = scmp.ne.s32.totalorder %s70, %s72
    %p79 = scmp.eq.s32.totalorder %s20, 1
    %p80 = por %p78, %p79
    %p81 = scmp.ne.s32.totalorder %s72, %s73
    %p82 = scmp.eq.s32.totalorder %s20, 0
    %p83 = por %p81, %p82
    %p84 = scmp.ne.s32.totalorder %s72, %s73
    %p85 = scmp.eq.s32.totalorder %s21, 1
    %p86 = por %p84, %p85
    %p88 = scmp.ne.s32.totalorder %s73, %s87
    %p89 = scmp.eq.s32.totalorder %s21, 0
    %p90 = por %p88, %p89
    %s92 = sadd.s32 %s91, 1
    %p95 = scmp.eq.s32.totalorder %s15, 1
    %p96 = scmp.ne.s32.totalorder %s91, %s93
    %p97 = scmp.eq.s32.totalorder %s15, 0
    %p98 = por %p96, %p97
    %p99 = scmp.ne.s32.totalorder %s91, %s93
    %p100 = scmp.eq.s32.totalorder %s20, 1
    %p101 = por %p99, %p100
    %p102 = scmp.ne.s32.totalorder %s93, %s94
    %p103 = scmp.eq.s32.totalorder %s20, 0
    %p104 = por %p102, %p103
    %p105 = scmp.ne.s32.totalorder %s93, %s94
    %p106 = scmp.eq.s32.totalorder %s21, 1
    %p107 = por %p105, %p106
    %p109 = scmp.ne.s32.totalorder %s94, %s108
    %p110 = scmp.eq.s32.totalorder %s21, 0
    %p111 = por %p109, %p110
    %s113 = sadd.s32 %s112, 1
    %p116 = scmp.eq.s32.totalorder %s15, 1
    %p117 = scmp.ne.s32.totalorder %s112, %s114
    %p118 = scmp.eq.s32.totalorder %s15, 0
    %p119 = por %p117, %p118
    %p120 = scmp.ne.s32.totalorder %s112, %s114
    %p121 = scmp.eq.s32.totalorder %s20, 1
    %p122 = por %p120, %p121
    %p123 = scmp.ne.s32.totalorder %s114, %s115
    %p124 = scmp.eq.s32.totalorder %s20, 0
    %p125 = por %p123, %p124
    %p126 = scmp.ne.s32.totalorder %s114, %s115
    %p127 = scmp.eq.s32.totalorder %s21, 1
    %p128 = por %p126, %p127
    %p130 = scmp.ne.s32.totalorder %s115, %s129
    %p131 = scmp.eq.s32.totalorder %s21, 0
    %p132 = por %p130, %p131
    %s134 = sadd.s32 %s133, 1
    %p137 = scmp.eq.s32.totalorder %s15, 1
    %p138 = scmp.ne.s32.totalorder %s133, %s135
    %p139 = scmp.eq.s32.totalorder %s15, 0
    %p140 = por %p138, %p139
    %p141 = scmp.ne.s32.totalorder %s133, %s135
    %p142 = scmp.eq.s32.totalorder %s20, 1
    %p143 = por %p141, %p142
    %p144 = scmp.ne.s32.totalorder %s135, %s136
    %p145 = scmp.eq.s32.totalorder %s20, 0
    %p146 = por %p144, %p145
    %p147 = scmp.ne.s32.totalorder %s135, %s136
    %p148 = scmp.eq.s32.totalorder %s21, 1
    %p149 = por %p147, %p148
    %p151 = scmp.ne.s32.totalorder %s136, %s150
    %p152 = scmp.eq.s32.totalorder %s21, 0
    %p153 = por %p151, %p152
    %s155 = sadd.s32 %s154, 1
    %p158 = scmp.eq.s32.totalorder %s15, 1
    %p159 = scmp.ne.s32.totalorder %s154, %s156
    %p160 = scmp.eq.s32.totalorder %s15, 0
    %p161 = por %p159, %p160
    %p162 = scmp.ne.s32.totalorder %s154, %s156
    %p163 = scmp.eq.s32.totalorder %s20, 1
    %p164 = por %p162, %p163
    %p165 = scmp.ne.s32.totalorder %s156, %s157
    %p166 = scmp.eq.s32.totalorder %s20, 0
    %p167 = por %p165, %p166
    %p168 = scmp.ne.s32.totalorder %s156, %s157
    %p169 = scmp.eq.s32.totalorder %s21, 1
    %p170 = por %p168, %p169
    %p172 = scmp.ne.s32.totalorder %s157, %s171
    %p173 = scmp.eq.s32.totalorder %s21, 0
    %p174 = por %p172, %p173
    %s176 = sadd.s32 %s175, 1
    %p179 = scmp.eq.s32.totalorder %s15, 1
    %p180 = scmp.ne.s32.totalorder %s175, %s177
    %p181 = scmp.eq.s32.totalorder %s15, 0
    %p182 = por %p180, %p181
    %p183 = scmp.ne.s32.totalorder %s175, %s177
    %p184 = scmp.eq.s32.totalorder %s20, 1
    %p185 = por %p183, %p184
    %p186 = scmp.ne.s32.totalorder %s177, %s178
    %p187 = scmp.eq.s32.totalorder %s20, 0
    %p188 = por %p186, %p187
    %p189 = scmp.ne.s32.totalorder %s177, %s178
    %p190 = scmp.eq.s32.totalorder %s21, 1
    %p191 = por %p189, %p190
    %p193 = scmp.ne.s32.totalorder %s178, %s192
    %p194 = scmp.eq.s32.totalorder %s21, 0
    %p195 = por %p193, %p194
    %s197 = sadd.s32 %s196, 1
    %p200 = scmp.eq.s32.totalorder %s15, 1
    %p201 = scmp.ne.s32.totalorder %s196, %s198
    %p202 = scmp.eq.s32.totalorder %s15, 0
    %p203 = por %p201, %p202
    %p204 = scmp.ne.s32.totalorder %s196, %s198
    %p205 = scmp.eq.s32.totalorder %s20, 1
    %p206 = por %p204, %p205
    %p207 = scmp.ne.s32.totalorder %s198, %s199
    %p208 = scmp.eq.s32.totalorder %s20, 0
    %p209 = por %p207, %p208
    %p210 = scmp.ne.s32.totalorder %s198, %s199
    %p211 = scmp.eq.s32.totalorder %s21, 1
    %p212 = por %p210, %p211
    %p214 = scmp.ne.s32.totalorder %s199, %s213
    %p215 = scmp.eq.s32.totalorder %s21, 0
    %p216 = por %p214, %p215
    %s217 = ssub.s32 %s15, %s22
    %p218 = scmp.eq.s32.totalorder %s217, 0
    %s220 = sadd.s32 %s219, 1
    %s221 = scalar_select %p218, %s219, %s220
    %p224 = pneg %p218
    %p225 = scmp.eq.s32.totalorder %s15, 1
    %p226 = por %p224, %p225
    %p227 = scmp.ne.s32.totalorder %s219, %s222
    %p228 = scmp.eq.s32.totalorder %s15, 0
    %p229 = por %p227, %p228
    %p230 = scmp.ne.s32.totalorder %s219, %s222
    %p231 = scmp.eq.s32.totalorder %s20, 1
    %p232 = por %p230, %p231
    %p233 = scmp.ne.s32.totalorder %s222, %s223
    %p234 = scmp.eq.s32.totalorder %s20, 0
    %p235 = por %p233, %p234
    %p236 = scmp.ne.s32.totalorder %s222, %s223
    %p237 = scmp.eq.s32.totalorder %s21, 1
    %p238 = por %p236, %p237
    %p240 = scmp.ne.s32.totalorder %s223, %s239
    %p241 = scmp.eq.s32.totalorder %s21, 0
    %p242 = por %p240, %p241
    %p243 = scmp.le.s32.totalorder 1, %s15
    %p244 = scmp.lt.s32.totalorder %s15, 3
    %p245 = pnand %p243, %p244
    %p246 = pneg %p245
    // Predicated region
    $region9: #{fnn_forward.1} parent=5 // pred_check
      _
    $region10: #{fnn_forward.1} parent=5 // pred_check_branch
      %248 = sbr.rel (%p245) target = $region12
    $region11: #{fnn_forward.1} parent=5 // pred_region
      %s249 = ssub.s32 %s15, 1
      // Predicated region
      $region13: #{fnn_forward.1} parent=11 // pred_check
        %p250 = pneg %p62
      $region14: #{fnn_forward.1} parent=11 // pred_check_branch
        %252 = sbr.rel (%p250) target = $region16
      $region15: #{fnn_forward.1} parent=11 // pred_region
        _
      $region16: #{fnn_forward.1} parent=11 // pred_fallthru
        _
      // Predicated region
      $region17: #{fnn_forward.1} parent=11 // pred_check
        %p253 = pneg %p83
      $region18: #{fnn_forward.1} parent=11 // pred_check_branch
        %255 = sbr.rel (%p253) target = $region20
      $region19: #{fnn_forward.1} parent=11 // pred_region
        _
      $region20: #{fnn_forward.1} parent=11 // pred_fallthru
        _
      // Predicated region
      $region21: #{fnn_forward.1} parent=11 // pred_check
        %p256 = pneg %p104
      $region22: #{fnn_forward.1} parent=11 // pred_check_branch
        %258 = sbr.rel (%p256) target = $region24
      $region23: #{fnn_forward.1} parent=11 // pred_region
        _
      $region24: #{fnn_forward.1} parent=11 // pred_fallthru
        _
      // Predicated region
      $region25: #{fnn_forward.1} parent=11 // pred_check
        %p259 = pneg %p125
      $region26: #{fnn_forward.1} parent=11 // pred_check_branch
        %261 = sbr.rel (%p259) target = $region28
      $region27: #{fnn_forward.1} parent=11 // pred_region
        _
      $region28: #{fnn_forward.1} parent=11 // pred_fallthru
        _
      // Predicated region
      $region29: #{fnn_forward.1} parent=11 // pred_check
        %p262 = pneg %p146
      $region30: #{fnn_forward.1} parent=11 // pred_check_branch
        %264 = sbr.rel (%p262) target = $region32
      $region31: #{fnn_forward.1} parent=11 // pred_region
        _
      $region32: #{fnn_forward.1} parent=11 // pred_fallthru
        _
      // Predicated region
      $region33: #{fnn_forward.1} parent=11 // pred_check
        %p265 = pneg %p167
      $region34: #{fnn_forward.1} parent=11 // pred_check_branch
        %267 = sbr.rel (%p265) target = $region36
      $region35: #{fnn_forward.1} parent=11 // pred_region
        _
      $region36: #{fnn_forward.1} parent=11 // pred_fallthru
        _
      // Predicated region
      $region37: #{fnn_forward.1} parent=11 // pred_check
        %p268 = pneg %p188
      $region38: #{fnn_forward.1} parent=11 // pred_check_branch
        %270 = sbr.rel (%p268) target = $region40
      $region39: #{fnn_forward.1} parent=11 // pred_region
        _
      $region40: #{fnn_forward.1} parent=11 // pred_fallthru
        _
      // Predicated region
      $region41: #{fnn_forward.1} parent=11 // pred_check
        %p271 = pneg %p209
      $region42: #{fnn_forward.1} parent=11 // pred_check_branch
        %273 = sbr.rel (%p271) target = $region44
      $region43: #{fnn_forward.1} parent=11 // pred_region
        _
      $region44: #{fnn_forward.1} parent=11 // pred_fallthru
        _
    $region12: #{fnn_forward.1} parent=5 // pred_fallthru
      _
    %p274 = scmp.lt.s32.totalorder %s15, 2
    // Predicated region
    $region45: #{fnn_forward.1} parent=5 // pred_check
      %p275 = pneg %p274
    $region46: #{fnn_forward.1} parent=5 // pred_check_branch
      %277 = sbr.rel (%p275) target = $region48
    $region47: #{fnn_forward.1} parent=5 // pred_region
      // Predicated region
      $region49: #{fnn_forward.1} parent=47 // pred_check
        %p278 = pneg %p35
      $region50: #{fnn_forward.1} parent=47 // pred_check_branch
        %280 = sbr.rel (%p278) target = $region52
      $region51: #{fnn_forward.1} parent=47 // pred_region
        %s281 = smul.u32 32, %s15
        %p282 = scmp.lt.s32.totalorder %s281, 63
        %s283 = scalar_select %p282, %s281, 63
        %s284 = smul.addr %s283, 8
        %s285 = scalar_lea.vmem %s0, %s284
        %s286 = smul.u32 32, %s15
      $region52: #{fnn_forward.1} parent=47 // pred_fallthru
        _
    $region48: #{fnn_forward.1} parent=5 // pred_fallthru
      _
    %p287 = scmp.le.s32.totalorder 1, %s15
    %p288 = scmp.lt.s32.totalorder %s15, 3
    %p289 = pnand %p287, %p288
    %p290 = pneg %p289
    // Predicated region
    $region53: #{fnn_forward.1} parent=5 // pred_check
      _
    $region54: #{fnn_forward.1} parent=5 // pred_check_branch
      %292 = sbr.rel (%p289) target = $region56
    $region55: #{fnn_forward.1} parent=5 // pred_region
      %s293 = ssub.s32 %s15, 1
      %s294 = smul.u32 32, %s20
      %p295 = scmp.lt.s32.totalorder %s294, 63
      %s296 = scalar_select %p295, %s294, 63
      %s297 = smul.addr %s296, 8
      %s298 = scalar_lea.vmem %s0, %s297
      %p299 = pneg %p41
      %p300 = pneg %p38
      %p301 = pneg %p62
      %p302 = pneg %p59
      %p303 = pneg %p83
      %p304 = pneg %p80
      %p305 = pneg %p104
      %p306 = pneg %p101
      %p307 = pneg %p125
      %p308 = pneg %p122
      %p309 = pneg %p146
      %p310 = pneg %p143
      %p311 = pneg %p167
      %p312 = pneg %p164
      %p313 = pneg %p188
      %p314 = pneg %p185
      %p315 = pneg %p209
      %p316 = pneg %p206
      %p317 = pneg %p235
      %p318 = pneg %p232
      %s319 = smul.u32 32, %s20
      %p320 = scmp.lt.s32.totalorder %s319, 63
      %s321 = scalar_select %p320, %s319, 63
      %s322 = smul.addr %s321, 8
      %s323 = scalar_lea.vmem %s9, %s322
      %s324 = smul.u32 32, %s20
      %p325 = scmp.lt.s32.totalorder %s324, 63
      %s326 = scalar_select %p325, %s324, 63
      %s327 = smul.addr %s326, 8
      %s328 = scalar_lea.vmem %s0, %s327
      %s329 = smul.u32 32, %s20
      %s330 = smul.u32 32, %s20
      %p331 = scmp.lt.s32.totalorder %s330, 63
      %s332 = scalar_select %p331, %s330, 63
      %s333 = smul.addr %s332, 8
      %s334 = scalar_lea.vmem %s9, %s333
      %s335 = smul.u32 32, %s20
      %v336 = vld [vmem:[%s328] sm:$0xff]
      %v337 = vld [vmem:[%s328 + $0x8] sm:$0xff]
      %v338 = vld [vmem:[%s328 + $0x10] sm:$0xff]
      %v339 = vld [vmem:[%s328 + $0x18] sm:$0xff]
      %v340 = vld [vmem:[%s328 + $0x20] sm:$0xff]
      %v341 = vld [vmem:[%s328 + $0x28] sm:$0xff]
      %v342 = vld [vmem:[%s328 + $0x30] sm:$0xff]
      %v343 = vld [vmem:[%s328 + $0x38] sm:$0xff]
      %v344 = vld [vmem:[%s328 + $0x40] sm:$0xff]
      %v345 = vld [vmem:[%s328 + $0x48] sm:$0xff]
      %v346 = vld [vmem:[%s328 + $0x50] sm:$0xff]
      %v347 = vld [vmem:[%s328 + $0x58] sm:$0xff]
      %v348 = vld [vmem:[%s328 + $0x60] sm:$0xff]
      %v349 = vld [vmem:[%s328 + $0x68] sm:$0xff]
      %v350 = vld [vmem:[%s328 + $0x70] sm:$0xff]
      %v351 = vld [vmem:[%s328 + $0x78] sm:$0xff]
      %v352 = vld [vmem:[%s328 + $0x80] sm:$0xff]
      %v353 = vld [vmem:[%s328 + $0x88] sm:$0xff]
      %v354 = vld [vmem:[%s328 + $0x90] sm:$0xff]
      %v355 = vld [vmem:[%s328 + $0x98] sm:$0xff]
      %v356 = vld [vmem:[%s328 + $0xa0] sm:$0xff]
      %v357 = vld [vmem:[%s328 + $0xa8] sm:$0xff]
      %v358 = vld [vmem:[%s328 + $0xb0] sm:$0xff]
      %v359 = vld [vmem:[%s328 + $0xb8] sm:$0xff]
      %v360 = vld [vmem:[%s328 + $0xc0] sm:$0xff]
      %v361 = vld [vmem:[%s328 + $0xc8] sm:$0xff]
      %v362 = vld [vmem:[%s328 + $0xd0] sm:$0xff]
      %v363 = vld [vmem:[%s328 + $0xd8] sm:$0xff]
      %v364 = vld [vmem:[%s328 + $0xe0] sm:$0xff]
      %v365 = vld [vmem:[%s328 + $0xe8] sm:$0xff]
      %v366 = vld [vmem:[%s328 + $0xf0] sm:$0xff]
      %v367 = vld [vmem:[%s328 + $0xf8] sm:$0xff]
      %v368 = vld [vmem:[%s1] sm:$0xff]
      %v369 = vld [vmem:[%s1 + $0x8] sm:$0xff]
      %v370 = vld [vmem:[%s1 + $0x10] sm:$0xff]
      %v371 = vld [vmem:[%s1 + $0x18] sm:$0xff]
      %v372 = vld [vmem:[%s1 + $0x20] sm:$0xff]
      %v373 = vld [vmem:[%s1 + $0x28] sm:$0xff]
      %v374 = vld [vmem:[%s1 + $0x30] sm:$0xff]
      %v375 = vld [vmem:[%s1 + $0x38] sm:$0xff]
      %v376 = vld [vmem:[%s1 + $0x40] sm:$0xff]
      %v377 = vld [vmem:[%s1 + $0x48] sm:$0xff]
      %v378 = vld [vmem:[%s1 + $0x50] sm:$0xff]
      %v379 = vld [vmem:[%s1 + $0x58] sm:$0xff]
      %v380 = vld [vmem:[%s1 + $0x60] sm:$0xff]
      %v381 = vld [vmem:[%s1 + $0x68] sm:$0xff]
      %v382 = vld [vmem:[%s1 + $0x70] sm:$0xff]
      %v383 = vld [vmem:[%s1 + $0x78] sm:$0xff]
      %v384 = vld [vmem:[%s1 + $0x80] sm:$0xff]
      %v385 = vld [vmem:[%s1 + $0x88] sm:$0xff]
      %v386 = vld [vmem:[%s1 + $0x90] sm:$0xff]
      %v387 = vld [vmem:[%s1 + $0x98] sm:$0xff]
      %v388 = vld [vmem:[%s1 + $0xa0] sm:$0xff]
      %v389 = vld [vmem:[%s1 + $0xa8] sm:$0xff]
      %v390 = vld [vmem:[%s1 + $0xb0] sm:$0xff]
      %v391 = vld [vmem:[%s1 + $0xb8] sm:$0xff]
      %v392 = vld [vmem:[%s1 + $0xc0] sm:$0xff]
      %v393 = vld [vmem:[%s1 + $0xc8] sm:$0xff]
      %v394 = vld [vmem:[%s1 + $0xd0] sm:$0xff]
      %v395 = vld [vmem:[%s1 + $0xd8] sm:$0xff]
      %v396 = vld [vmem:[%s1 + $0xe0] sm:$0xff]
      %v397 = vld [vmem:[%s1 + $0xe8] sm:$0xff]
      %v398 = vld [vmem:[%s1 + $0xf0] sm:$0xff]
      %v399 = vld [vmem:[%s1 + $0xf8] sm:$0xff]
      %v400 = vld [vmem:[%s2] sm:$0x3]
      %v402 = vlaneseq
      %v403 = vshrl.u32 %v402, 7
      %v404 = vsub.s32 0, %v403
      %v405 = vrot.slane %v400, %v404
      %v406 = vlaneseq
      %v407 = vshrl.u32 %v406, 7
      %v408 = vsub.s32 1, %v407
      %v409 = vrot.slane %v400, %v408
      %412 = vmatprep.subr.mxu0 %v369
      %413 = vmatpush1.msra.mxu0 %v368
      %414 = vmatprep.subr.mxu0 %v371
      %415 = vmatpush1.msra.mxu0 %v370
      %416 = vmatprep.subr.mxu0 %v373
      %417 = vmatpush1.msra.mxu0 %v372
      %418 = vmatprep.subr.mxu0 %v375
      %419 = vmatpush1.msra.mxu0 %v374
      %420 = vmatprep.subr.mxu0 %v377
      %421 = vmatpush1.msra.mxu0 %v376
      %422 = vmatprep.subr.mxu0 %v379
      %423 = vmatpush1.msra.mxu0 %v378
      %424 = vmatprep.subr.mxu0 %v381
      %425 = vmatpush1.msra.mxu0 %v380
      %426 = vmatprep.subr.mxu0 %v383
      %427 = vmatpush1.msra.mxu0 %v382
      %428 = vmatprep.subr.mxu0 %v385
      %429 = vmatpush1.msra.mxu0 %v384
      %430 = vmatprep.subr.mxu0 %v387
      %431 = vmatpush1.msra.mxu0 %v386
      %432 = vmatprep.subr.mxu0 %v389
      %433 = vmatpush1.msra.mxu0 %v388
      %434 = vmatprep.subr.mxu0 %v391
      %435 = vmatpush1.msra.mxu0 %v390
      %436 = vmatprep.subr.mxu0 %v393
      %437 = vmatpush1.msra.mxu0 %v392
      %438 = vmatprep.subr.mxu0 %v395
      %439 = vmatpush1.msra.mxu0 %v394
      %440 = vmatprep.subr.mxu0 %v397
      %441 = vmatpush1.msra.mxu0 %v396
      %442 = vmatprep.subr.mxu0 %v399
      %443 = vmatpush1.msra.mxu0 %v398
      %444 = vmatprep.subr.mxu0 0.0
      %445 = vmatpush1.msra.mxu0 0.0
      %446 = vmatprep.subr.mxu0 0.0
      %447 = vmatpush1.msra.mxu0 0.0
      %448 = vmatprep.subr.mxu0 0.0
      %449 = vmatpush1.msra.mxu0 0.0
      %450 = vmatprep.subr.mxu0 0.0
      %451 = vmatpush1.msra.mxu0 0.0
      %452 = vmatprep.subr.mxu0 0.0
      %453 = vmatpush1.msra.mxu0 0.0
      %454 = vmatprep.subr.mxu0 0.0
      %455 = vmatpush1.msra.mxu0 0.0
      %456 = vmatprep.subr.mxu0 0.0
      %457 = vmatpush1.msra.mxu0 0.0
      %458 = vmatprep.subr.mxu0 0.0
      %459 = vmatpush1.msra.mxu0 0.0
      %460 = vmatprep.subr.mxu0 0.0
      %461 = vmatpush1.msra.mxu0 0.0
      %462 = vmatprep.subr.mxu0 0.0
      %463 = vmatpush1.msra.mxu0 0.0
      %464 = vmatprep.subr.mxu0 0.0
      %465 = vmatpush1.msra.mxu0 0.0
      %466 = vmatprep.subr.mxu0 0.0
      %467 = vmatpush1.msra.mxu0 0.0
      %468 = vmatprep.subr.mxu0 0.0
      %469 = vmatpush1.msra.mxu0 0.0
      %470 = vmatprep.subr.mxu0 0.0
      %471 = vmatpush1.msra.mxu0 0.0
      %472 = vmatprep.subr.mxu0 0.0
      %473 = vmatpush1.msra.mxu0 0.0
      %474 = vmatprep.subr.mxu0 0.0
      %475 = vmatpush1.msra.mxu0 0.0
      %476 = vmatprep.mubr.f32.mxu0 0.0
      %477 = vmatmul.mubr.f32.gmra.mrb[0].mxu0 %v336
      %v478 = vpop.f32.mrb[0].mxu0
      %v479 = vadd.f32 %v405, %v478
      %v480 = vpop.f32.mrb[0].mxu0
      %v481 = vadd.f32 %v409, %v480
      %482 = vmatprep.mubr.f32.mxu0 0.0
      %483 = vmatmul.mubr.f32.gmra.mrb[0].mxu0 %v337
      %v484 = vpop.f32.mrb[0].mxu0
      %v485 = vadd.f32 %v405, %v484
      %v486 = vpop.f32.mrb[0].mxu0
      %v487 = vadd.f32 %v409, %v486
      %488 = vmatprep.mubr.f32.mxu0 0.0
      %489 = vmatmul.mubr.f32.gmra.mrb[0].mxu0 %v338
      %v490 = vpop.f32.mrb[0].mxu0
      %v491 = vadd.f32 %v405, %v490
      %v492 = vpop.f32.mrb[0].mxu0
      %v493 = vadd.f32 %v409, %v492
      %494 = vmatprep.mubr.f32.mxu0 0.0
      %495 = vmatmul.mubr.f32.gmra.mrb[0].mxu0 %v339
      %v496 = vpop.f32.mrb[0].mxu0
      %v497 = vadd.f32 %v405, %v496
      %v498 = vpop.f32.mrb[0].mxu0
      %v499 = vadd.f32 %v409, %v498
      %500 = vmatprep.mubr.f32.mxu0 0.0
      %501 = vmatmul.mubr.f32.gmra.mrb[0].mxu0 %v340
      %v502 = vpop.f32.mrb[0].mxu0
      %v503 = vadd.f32 %v405, %v502
      %v504 = vpop.f32.mrb[0].mxu0
      %v505 = vadd.f32 %v409, %v504
      %506 = vmatprep.mubr.f32.mxu0 0.0
      %507 = vmatmul.mubr.f32.gmra.mrb[0].mxu0 %v341
      %v508 = vpop.f32.mrb[0].mxu0
      %v509 = vadd.f32 %v405, %v508
      %v510 = vpop.f32.mrb[0].mxu0
      %v511 = vadd.f32 %v409, %v510
      %512 = vmatprep.mubr.f32.mxu0 0.0
      %513 = vmatmul.mubr.f32.gmra.mrb[0].mxu0 %v342
      %v514 = vpop.f32.mrb[0].mxu0
      %v515 = vadd.f32 %v405, %v514
      %v516 = vpop.f32.mrb[0].mxu0
      %v517 = vadd.f32 %v409, %v516
      %518 = vmatprep.mubr.f32.mxu0 0.0
      %519 = vmatmul.mubr.f32.gmra.mrb[0].mxu0 %v343
      %v520 = vpop.f32.mrb[0].mxu0
      %v521 = vadd.f32 %v405, %v520
      %v522 = vpop.f32.mrb[0].mxu0
      %v523 = vadd.f32 %v409, %v522
      %524 = vmatprep.mubr.f32.mxu0 0.0
      %525 = vmatmul.mubr.f32.gmra.mrb[0].mxu0 %v344
      %v526 = vpop.f32.mrb[0].mxu0
      %v527 = vadd.f32 %v405, %v526
      %v528 = vpop.f32.mrb[0].mxu0
      %v529 = vadd.f32 %v409, %v528
      %530 = vmatprep.mubr.f32.mxu0 0.0
      %531 = vmatmul.mubr.f32.gmra.mrb[0].mxu0 %v345
      %v532 = vpop.f32.mrb[0].mxu0
      %v533 = vadd.f32 %v405, %v532
      %v534 = vpop.f32.mrb[0].mxu0
      %v535 = vadd.f32 %v409, %v534
      %536 = vmatprep.mubr.f32.mxu0 0.0
      %537 = vmatmul.mubr.f32.gmra.mrb[0].mxu0 %v346
      %v538 = vpop.f32.mrb[0].mxu0
      %v539 = vadd.f32 %v405, %v538
      %v540 = vpop.f32.mrb[0].mxu0
      %v541 = vadd.f32 %v409, %v540
      %542 = vmatprep.mubr.f32.mxu0 0.0
      %543 = vmatmul.mubr.f32.gmra.mrb[0].mxu0 %v347
      %v544 = vpop.f32.mrb[0].mxu0
      %v545 = vadd.f32 %v405, %v544
      %v546 = vpop.f32.mrb[0].mxu0
      %v547 = vadd.f32 %v409, %v546
      %548 = vmatprep.mubr.f32.mxu0 0.0
      %549 = vmatmul.mubr.f32.gmra.mrb[0].mxu0 %v348
      %v550 = vpop.f32.mrb[0].mxu0
      %v551 = vadd.f32 %v405, %v550
      %v552 = vpop.f32.mrb[0].mxu0
      %v553 = vadd.f32 %v409, %v552
      %554 = vmatprep.mubr.f32.mxu0 0.0
      %555 = vmatmul.mubr.f32.gmra.mrb[0].mxu0 %v349
      %v556 = vpop.f32.mrb[0].mxu0
      %v557 = vadd.f32 %v405, %v556
      %v558 = vpop.f32.mrb[0].mxu0
      %v559 = vadd.f32 %v409, %v558
      %560 = vmatprep.mubr.f32.mxu0 0.0
      %561 = vmatmul.mubr.f32.gmra.mrb[0].mxu0 %v350
      %v562 = vpop.f32.mrb[0].mxu0
      %v563 = vadd.f32 %v405, %v562
      %v564 = vpop.f32.mrb[0].mxu0
      %v565 = vadd.f32 %v409, %v564
      %566 = vmatprep.mubr.f32.mxu0 0.0
      %567 = vmatmul.mubr.f32.gmra.mrb[0].mxu0 %v351
      %v568 = vpop.f32.mrb[0].mxu0
      %v569 = vadd.f32 %v405, %v568
      %v570 = vpop.f32.mrb[0].mxu0
      %v571 = vadd.f32 %v409, %v570
      %572 = vmatprep.mubr.f32.mxu0 0.0
      %573 = vmatmul.mubr.f32.gmra.mrb[0].mxu0 %v352
      %v574 = vpop.f32.mrb[0].mxu0
      %v575 = vadd.f32 %v405, %v574
      %v576 = vpop.f32.mrb[0].mxu0
      %v577 = vadd.f32 %v409, %v576
      %578 = vmatprep.mubr.f32.mxu0 0.0
      %579 = vmatmul.mubr.f32.gmra.mrb[0].mxu0 %v353
      %v580 = vpop.f32.mrb[0].mxu0
      %v581 = vadd.f32 %v405, %v580
      %v582 = vpop.f32.mrb[0].mxu0
      %v583 = vadd.f32 %v409, %v582
      %584 = vmatprep.mubr.f32.mxu0 0.0
      %585 = vmatmul.mubr.f32.gmra.mrb[0].mxu0 %v354
      %v586 = vpop.f32.mrb[0].mxu0
      %v587 = vadd.f32 %v405, %v586
      %v588 = vpop.f32.mrb[0].mxu0
      %v589 = vadd.f32 %v409, %v588
      %590 = vmatprep.mubr.f32.mxu0 0.0
      %591 = vmatmul.mubr.f32.gmra.mrb[0].mxu0 %v355
      %v592 = vpop.f32.mrb[0].mxu0
      %v593 = vadd.f32 %v405, %v592
      %v594 = vpop.f32.mrb[0].mxu0
      %v595 = vadd.f32 %v409, %v594
      %596 = vmatprep.mubr.f32.mxu0 0.0
      %597 = vmatmul.mubr.f32.gmra.mrb[0].mxu0 %v356
      %v598 = vpop.f32.mrb[0].mxu0
      %v599 = vadd.f32 %v405, %v598
      %v600 = vpop.f32.mrb[0].mxu0
      %v601 = vadd.f32 %v409, %v600
      %602 = vmatprep.mubr.f32.mxu0 0.0
      %603 = vmatmul.mubr.f32.gmra.mrb[0].mxu0 %v357
      %v604 = vpop.f32.mrb[0].mxu0
      %v605 = vadd.f32 %v405, %v604
      %v606 = vpop.f32.mrb[0].mxu0
      %v607 = vadd.f32 %v409, %v606
      %608 = vmatprep.mubr.f32.mxu0 0.0
      %609 = vmatmul.mubr.f32.gmra.mrb[0].mxu0 %v358
      %v610 = vpop.f32.mrb[0].mxu0
      %v611 = vadd.f32 %v405, %v610
      %v612 = vpop.f32.mrb[0].mxu0
      %v613 = vadd.f32 %v409, %v612
      %614 = vmatprep.mubr.f32.mxu0 0.0
      %615 = vmatmul.mubr.f32.gmra.mrb[0].mxu0 %v359
      %v616 = vpop.f32.mrb[0].mxu0
      %v617 = vadd.f32 %v405, %v616
      %v618 = vpop.f32.mrb[0].mxu0
      %v619 = vadd.f32 %v409, %v618
      %620 = vmatprep.mubr.f32.mxu0 0.0
      %621 = vmatmul.mubr.f32.gmra.mrb[0].mxu0 %v360
      %v622 = vpop.f32.mrb[0].mxu0
      %v623 = vadd.f32 %v405, %v622
      %v624 = vpop.f32.mrb[0].mxu0
      %v625 = vadd.f32 %v409, %v624
      %626 = vmatprep.mubr.f32.mxu0 0.0
      %627 = vmatmul.mubr.f32.gmra.mrb[0].mxu0 %v361
      %v628 = vpop.f32.mrb[0].mxu0
      %v629 = vadd.f32 %v405, %v628
      %v630 = vpop.f32.mrb[0].mxu0
      %v631 = vadd.f32 %v409, %v630
      %632 = vmatprep.mubr.f32.mxu0 0.0
      %633 = vmatmul.mubr.f32.gmra.mrb[0].mxu0 %v362
      %v634 = vpop.f32.mrb[0].mxu0
      %v635 = vadd.f32 %v405, %v634
      %v636 = vpop.f32.mrb[0].mxu0
      %v637 = vadd.f32 %v409, %v636
      %638 = vmatprep.mubr.f32.mxu0 0.0
      %639 = vmatmul.mubr.f32.gmra.mrb[0].mxu0 %v363
      %v640 = vpop.f32.mrb[0].mxu0
      %v641 = vadd.f32 %v405, %v640
      %v642 = vpop.f32.mrb[0].mxu0
      %v643 = vadd.f32 %v409, %v642
      %644 = vmatprep.mubr.f32.mxu0 0.0
      %645 = vmatmul.mubr.f32.gmra.mrb[0].mxu0 %v364
      %v646 = vpop.f32.mrb[0].mxu0
      %v647 = vadd.f32 %v405, %v646
      %v648 = vpop.f32.mrb[0].mxu0
      %v649 = vadd.f32 %v409, %v648
      %650 = vmatprep.mubr.f32.mxu0 0.0
      %651 = vmatmul.mubr.f32.gmra.mrb[0].mxu0 %v365
      %v652 = vpop.f32.mrb[0].mxu0
      %v653 = vadd.f32 %v405, %v652
      %v654 = vpop.f32.mrb[0].mxu0
      %v655 = vadd.f32 %v409, %v654
      %656 = vmatprep.mubr.f32.mxu0 0.0
      %657 = vmatmul.mubr.f32.gmra.mrb[0].mxu0 %v366
      %v658 = vpop.f32.mrb[0].mxu0
      %v659 = vadd.f32 %v405, %v658
      %v660 = vpop.f32.mrb[0].mxu0
      %v661 = vadd.f32 %v409, %v660
      %662 = vmatprep.mubr.f32.mxu0 0.0
      %663 = vmatmul.mubr.f32.gmra.mrb[0].mxu0 %v367
      %v664 = vpop.f32.mrb[0].mxu0
      %v665 = vadd.f32 %v405, %v664
      %v666 = vpop.f32.mrb[0].mxu0
      %v667 = vadd.f32 %v409, %v666
      %668 = vdwg.mxu0
      %v669 = vmax.f32 %v479, 0.0
      %v670 = vmax.f32 %v481, 0.0
      %v671 = vmax.f32 %v485, 0.0
      %v672 = vmax.f32 %v487, 0.0
      %v673 = vmax.f32 %v491, 0.0
      %v674 = vmax.f32 %v493, 0.0
      %v675 = vmax.f32 %v497, 0.0
      %v676 = vmax.f32 %v499, 0.0
      %v677 = vmax.f32 %v503, 0.0
      %v678 = vmax.f32 %v505, 0.0
      %v679 = vmax.f32 %v509, 0.0
      %v680 = vmax.f32 %v511, 0.0
      %v681 = vmax.f32 %v515, 0.0
      %v682 = vmax.f32 %v517, 0.0
      %v683 = vmax.f32 %v521, 0.0
      %v684 = vmax.f32 %v523, 0.0
      %v685 = vmax.f32 %v527, 0.0
      %v686 = vmax.f32 %v529, 0.0
      %v687 = vmax.f32 %v533, 0.0
      %v688 = vmax.f32 %v535, 0.0
      %v689 = vmax.f32 %v539, 0.0
      %v690 = vmax.f32 %v541, 0.0
      %v691 = vmax.f32 %v545, 0.0
      %v692 = vmax.f32 %v547, 0.0
      %v693 = vmax.f32 %v551, 0.0
      %v694 = vmax.f32 %v553, 0.0
      %v695 = vmax.f32 %v557, 0.0
      %v696 = vmax.f32 %v559, 0.0
      %v697 = vmax.f32 %v563, 0.0
      %v698 = vmax.f32 %v565, 0.0
      %v699 = vmax.f32 %v569, 0.0
      %v700 = vmax.f32 %v571, 0.0
      %v701 = vmax.f32 %v575, 0.0
      %v702 = vmax.f32 %v577, 0.0
      %v703 = vmax.f32 %v581, 0.0
      %v704 = vmax.f32 %v583, 0.0
      %v705 = vmax.f32 %v587, 0.0
      %v706 = vmax.f32 %v589, 0.0
      %v707 = vmax.f32 %v593, 0.0
      %v708 = vmax.f32 %v595, 0.0
      %v709 = vmax.f32 %v599, 0.0
      %v710 = vmax.f32 %v601, 0.0
      %v711 = vmax.f32 %v605, 0.0
      %v712 = vmax.f32 %v607, 0.0
      %v713 = vmax.f32 %v611, 0.0
      %v714 = vmax.f32 %v613, 0.0
      %v715 = vmax.f32 %v617, 0.0
      %v716 = vmax.f32 %v619, 0.0
      %v717 = vmax.f32 %v623, 0.0
      %v718 = vmax.f32 %v625, 0.0
      %v719 = vmax.f32 %v629, 0.0
      %v720 = vmax.f32 %v631, 0.0
      %v721 = vmax.f32 %v635, 0.0
      %v722 = vmax.f32 %v637, 0.0
      %v723 = vmax.f32 %v641, 0.0
      %v724 = vmax.f32 %v643, 0.0
      %v725 = vmax.f32 %v647, 0.0
      %v726 = vmax.f32 %v649, 0.0
      %v727 = vmax.f32 %v653, 0.0
      %v728 = vmax.f32 %v655, 0.0
      %v729 = vmax.f32 %v659, 0.0
      %v730 = vmax.f32 %v661, 0.0
      %v731 = vmax.f32 %v665, 0.0
      %v732 = vmax.f32 %v667, 0.0
      %v733 = vld [vmem:[%s3] sm:$0xff]
      %v734 = vld [vmem:[%s3 + $0x8] sm:$0xff]
      %v735 = vld [vmem:[%s3 + $0x10] sm:$0xff]
      %v736 = vld [vmem:[%s3 + $0x18] sm:$0xff]
      %v737 = vld [vmem:[%s3 + $0x20] sm:$0xff]
      %v738 = vld [vmem:[%s3 + $0x28] sm:$0xff]
      %v739 = vld [vmem:[%s3 + $0x30] sm:$0xff]
      %v740 = vld [vmem:[%s3 + $0x38] sm:$0xff]
      %v741 = vld [vmem:[%s3 + $0x40] sm:$0xff]
      %v742 = vld [vmem:[%s3 + $0x48] sm:$0xff]
      %v743 = vld [vmem:[%s3 + $0x50] sm:$0xff]
      %v744 = vld [vmem:[%s3 + $0x58] sm:$0xff]
      %v745 = vld [vmem:[%s3 + $0x60] sm:$0xff]
      %v746 = vld [vmem:[%s3 + $0x68] sm:$0xff]
      %v747 = vld [vmem:[%s3 + $0x70] sm:$0xff]
      %v748 = vld [vmem:[%s3 + $0x78] sm:$0xff]
      %v749 = vld [vmem:[%s3 + $0x80] sm:$0xff]
      %v750 = vld [vmem:[%s3 + $0x88] sm:$0xff]
      %v751 = vld [vmem:[%s3 + $0x90] sm:$0xff]
      %v752 = vld [vmem:[%s3 + $0x98] sm:$0xff]
      %v753 = vld [vmem:[%s3 + $0xa0] sm:$0xff]
      %v754 = vld [vmem:[%s3 + $0xa8] sm:$0xff]
      %v755 = vld [vmem:[%s3 + $0xb0] sm:$0xff]
      %v756 = vld [vmem:[%s3 + $0xb8] sm:$0xff]
      %v757 = vld [vmem:[%s3 + $0xc0] sm:$0xff]
      %v758 = vld [vmem:[%s3 + $0xc8] sm:$0xff]
      %v759 = vld [vmem:[%s3 + $0xd0] sm:$0xff]
      %v760 = vld [vmem:[%s3 + $0xd8] sm:$0xff]
      %v761 = vld [vmem:[%s3 + $0xe0] sm:$0xff]
      %v762 = vld [vmem:[%s3 + $0xe8] sm:$0xff]
      %v763 = vld [vmem:[%s3 + $0xf0] sm:$0xff]
      %v764 = vld [vmem:[%s3 + $0xf8] sm:$0xff]
      %v765 = vld [vmem:[%s4] sm:$0x1]
      %v767 = vlaneseq
      %v768 = vshrl.u32 %v767, 7
      %v769 = vsub.s32 0, %v768
      %v770 = vrot.slane %v765, %v769
      %772 = vmatprep.subr.mxu0 0.0
      %773 = vmatpush1.msra.mxu0 %v733
      %774 = vmatprep.subr.mxu0 0.0
      %775 = vmatpush1.msra.mxu0 %v734
      %776 = vmatprep.subr.mxu0 0.0
      %777 = vmatpush1.msra.mxu0 %v735
      %778 = vmatprep.subr.mxu0 0.0
      %779 = vmatpush1.msra.mxu0 %v736
      %780 = vmatprep.subr.mxu0 0.0
      %781 = vmatpush1.msra.mxu0 %v737
      %782 = vmatprep.subr.mxu0 0.0
      %783 = vmatpush1.msra.mxu0 %v738
      %784 = vmatprep.subr.mxu0 0.0
      %785 = vmatpush1.msra.mxu0 %v739
      %786 = vmatprep.subr.mxu0 0.0
      %787 = vmatpush1.msra.mxu0 %v740
      %788 = vmatprep.subr.mxu0 0.0
      %789 = vmatpush1.msra.mxu0 %v741
      %790 = vmatprep.subr.mxu0 0.0
      %791 = vmatpush1.msra.mxu0 %v742
      %792 = vmatprep.subr.mxu0 0.0
      %793 = vmatpush1.msra.mxu0 %v743
      %794 = vmatprep.subr.mxu0 0.0
      %795 = vmatpush1.msra.mxu0 %v744
      %796 = vmatprep.subr.mxu0 0.0
      %797 = vmatpush1.msra.mxu0 %v745
      %798 = vmatprep.subr.mxu0 0.0
      %799 = vmatpush1.msra.mxu0 %v746
      %800 = vmatprep.subr.mxu0 0.0
      %801 = vmatpush1.msra.mxu0 %v747
      %802 = vmatprep.subr.mxu0 0.0
      %803 = vmatpush1.msra.mxu0 %v748
      %804 = vmatprep.subr.mxu0 0.0
      %805 = vmatpush1.msra.mxu0 %v749
      %806 = vmatprep.subr.mxu0 0.0
      %807 = vmatpush1.msra.mxu0 %v750
      %808 = vmatprep.subr.mxu0 0.0
      %809 = vmatpush1.msra.mxu0 %v751
      %810 = vmatprep.subr.mxu0 0.0
      %811 = vmatpush1.msra.mxu0 %v752
      %812 = vmatprep.subr.mxu0 0.0
      %813 = vmatpush1.msra.mxu0 %v753
      %814 = vmatprep.subr.mxu0 0.0
      %815 = vmatpush1.msra.mxu0 %v754
      %816 = vmatprep.subr.mxu0 0.0
      %817 = vmatpush1.msra.mxu0 %v755
      %818 = vmatprep.subr.mxu0 0.0
      %819 = vmatpush1.msra.mxu0 %v756
      %820 = vmatprep.subr.mxu0 0.0
      %821 = vmatpush1.msra.mxu0 %v757
      %822 = vmatprep.subr.mxu0 0.0
      %823 = vmatpush1.msra.mxu0 %v758
      %824 = vmatprep.subr.mxu0 0.0
      %825 = vmatpush1.msra.mxu0 %v759
      %826 = vmatprep.subr.mxu0 0.0
      %827 = vmatpush1.msra.mxu0 %v760
      %828 = vmatprep.subr.mxu0 0.0
      %829 = vmatpush1.msra.mxu0 %v761
      %830 = vmatprep.subr.mxu0 0.0
      %831 = vmatpush1.msra.mxu0 %v762
      %832 = vmatprep.subr.mxu0 0.0
      %833 = vmatpush1.msra.mxu0 %v763
      %834 = vmatprep.subr.mxu0 0.0
      %835 = vmatpush1.msra.mxu0 %v764
      %836 = vmatprep.mubr.f32.mxu0 %v670
      %837 = vmatmul.mubr.f32.gmra.mrb[0].mxu0 %v669
      %v838 = vpop.f32.mrb[0].mxu0
      %v839 = vadd.f32 %v770, %v838
      %v840 = vpop.f32.mrb[0].mxu0
      %841 = vmatprep.mubr.f32.mxu0 %v672
      %842 = vmatmul.mubr.f32.gmra.mrb[0].mxu0 %v671
      %v843 = vpop.f32.mrb[0].mxu0
      %v844 = vadd.f32 %v770, %v843
      %v845 = vpop.f32.mrb[0].mxu0
      %846 = vmatprep.mubr.f32.mxu0 %v674
      %847 = vmatmul.mubr.f32.gmra.mrb[0].mxu0 %v673
      %v848 = vpop.f32.mrb[0].mxu0
      %v849 = vadd.f32 %v770, %v848
      %v850 = vpop.f32.mrb[0].mxu0
      %851 = vmatprep.mubr.f32.mxu0 %v676
      %852 = vmatmul.mubr.f32.gmra.mrb[0].mxu0 %v675
      %v853 = vpop.f32.mrb[0].mxu0
      %v854 = vadd.f32 %v770, %v853
      %v855 = vpop.f32.mrb[0].mxu0
      %856 = vmatprep.mubr.f32.mxu0 %v678
      %857 = vmatmul.mubr.f32.gmra.mrb[0].mxu0 %v677
      %v858 = vpop.f32.mrb[0].mxu0
      %v859 = vadd.f32 %v770, %v858
      %v860 = vpop.f32.mrb[0].mxu0
      %861 = vmatprep.mubr.f32.mxu0 %v680
      %862 = vmatmul.mubr.f32.gmra.mrb[0].mxu0 %v679
      %v863 = vpop.f32.mrb[0].mxu0
      %v864 = vadd.f32 %v770, %v863
      %v865 = vpop.f32.mrb[0].mxu0
      %866 = vmatprep.mubr.f32.mxu0 %v682
      %867 = vmatmul.mubr.f32.gmra.mrb[0].mxu0 %v681
      %v868 = vpop.f32.mrb[0].mxu0
      %v869 = vadd.f32 %v770, %v868
      %v870 = vpop.f32.mrb[0].mxu0
      %871 = vmatprep.mubr.f32.mxu0 %v684
      %872 = vmatmul.mubr.f32.gmra.mrb[0].mxu0 %v683
      %v873 = vpop.f32.mrb[0].mxu0
      %v874 = vadd.f32 %v770, %v873
      %v875 = vpop.f32.mrb[0].mxu0
      %876 = vmatprep.mubr.f32.mxu0 %v686
      %877 = vmatmul.mubr.f32.gmra.mrb[0].mxu0 %v685
      %v878 = vpop.f32.mrb[0].mxu0
      %v879 = vadd.f32 %v770, %v878
      %v880 = vpop.f32.mrb[0].mxu0
      %881 = vmatprep.mubr.f32.mxu0 %v688
      %882 = vmatmul.mubr.f32.gmra.mrb[0].mxu0 %v687
      %v883 = vpop.f32.mrb[0].mxu0
      %v884 = vadd.f32 %v770, %v883
      %v885 = vpop.f32.mrb[0].mxu0
      %886 = vmatprep.mubr.f32.mxu0 %v690
      %887 = vmatmul.mubr.f32.gmra.mrb[0].mxu0 %v689
      %v888 = vpop.f32.mrb[0].mxu0
      %v889 = vadd.f32 %v770, %v888
      %v890 = vpop.f32.mrb[0].mxu0
      %891 = vmatprep.mubr.f32.mxu0 %v692
      %892 = vmatmul.mubr.f32.gmra.mrb[0].mxu0 %v691
      %v893 = vpop.f32.mrb[0].mxu0
      %v894 = vadd.f32 %v770, %v893
      %v895 = vpop.f32.mrb[0].mxu0
      %896 = vmatprep.mubr.f32.mxu0 %v694
      %897 = vmatmul.mubr.f32.gmra.mrb[0].mxu0 %v693
      %v898 = vpop.f32.mrb[0].mxu0
      %v899 = vadd.f32 %v770, %v898
      %v900 = vpop.f32.mrb[0].mxu0
      %901 = vmatprep.mubr.f32.mxu0 %v696
      %902 = vmatmul.mubr.f32.gmra.mrb[0].mxu0 %v695
      %v903 = vpop.f32.mrb[0].mxu0
      %v904 = vadd.f32 %v770, %v903
      %v905 = vpop.f32.mrb[0].mxu0
      %906 = vmatprep.mubr.f32.mxu0 %v698
      %907 = vmatmul.mubr.f32.gmra.mrb[0].mxu0 %v697
      %v908 = vpop.f32.mrb[0].mxu0
      %v909 = vadd.f32 %v770, %v908
      %v910 = vpop.f32.mrb[0].mxu0
      %911 = vmatprep.mubr.f32.mxu0 %v700
      %912 = vmatmul.mubr.f32.gmra.mrb[0].mxu0 %v699
      %v913 = vpop.f32.mrb[0].mxu0
      %v914 = vadd.f32 %v770, %v913
      %v915 = vpop.f32.mrb[0].mxu0
      %916 = vmatprep.mubr.f32.mxu0 %v702
      %917 = vmatmul.mubr.f32.gmra.mrb[0].mxu0 %v701
      %v918 = vpop.f32.mrb[0].mxu0
      %v919 = vadd.f32 %v770, %v918
      %v920 = vpop.f32.mrb[0].mxu0
      %921 = vmatprep.mubr.f32.mxu0 %v704
      %922 = vmatmul.mubr.f32.gmra.mrb[0].mxu0 %v703
      %v923 = vpop.f32.mrb[0].mxu0
      %v924 = vadd.f32 %v770, %v923
      %v925 = vpop.f32.mrb[0].mxu0
      %926 = vmatprep.mubr.f32.mxu0 %v706
      %927 = vmatmul.mubr.f32.gmra.mrb[0].mxu0 %v705
      %v928 = vpop.f32.mrb[0].mxu0
      %v929 = vadd.f32 %v770, %v928
      %v930 = vpop.f32.mrb[0].mxu0
      %931 = vmatprep.mubr.f32.mxu0 %v708
      %932 = vmatmul.mubr.f32.gmra.mrb[0].mxu0 %v707
      %v933 = vpop.f32.mrb[0].mxu0
      %v934 = vadd.f32 %v770, %v933
      %v935 = vpop.f32.mrb[0].mxu0
      %936 = vmatprep.mubr.f32.mxu0 %v710
      %937 = vmatmul.mubr.f32.gmra.mrb[0].mxu0 %v709
      %v938 = vpop.f32.mrb[0].mxu0
      %v939 = vadd.f32 %v770, %v938
      %v940 = vpop.f32.mrb[0].mxu0
      %941 = vmatprep.mubr.f32.mxu0 %v712
      %942 = vmatmul.mubr.f32.gmra.mrb[0].mxu0 %v711
      %v943 = vpop.f32.mrb[0].mxu0
      %v944 = vadd.f32 %v770, %v943
      %v945 = vpop.f32.mrb[0].mxu0
      %946 = vmatprep.mubr.f32.mxu0 %v714
      %947 = vmatmul.mubr.f32.gmra.mrb[0].mxu0 %v713
      %v948 = vpop.f32.mrb[0].mxu0
      %v949 = vadd.f32 %v770, %v948
      %v950 = vpop.f32.mrb[0].mxu0
      %951 = vmatprep.mubr.f32.mxu0 %v716
      %952 = vmatmul.mubr.f32.gmra.mrb[0].mxu0 %v715
      %v953 = vpop.f32.mrb[0].mxu0
      %v954 = vadd.f32 %v770, %v953
      %v955 = vpop.f32.mrb[0].mxu0
      %956 = vmatprep.mubr.f32.mxu0 %v718
      %957 = vmatmul.mubr.f32.gmra.mrb[0].mxu0 %v717
      %v958 = vpop.f32.mrb[0].mxu0
      %v959 = vadd.f32 %v770, %v958
      %v960 = vpop.f32.mrb[0].mxu0
      %961 = vmatprep.mubr.f32.mxu0 %v720
      %962 = vmatmul.mubr.f32.gmra.mrb[0].mxu0 %v719
      %v963 = vpop.f32.mrb[0].mxu0
      %v964 = vadd.f32 %v770, %v963
      %v965 = vpop.f32.mrb[0].mxu0
      %966 = vmatprep.mubr.f32.mxu0 %v722
      %967 = vmatmul.mubr.f32.gmra.mrb[0].mxu0 %v721
      %v968 = vpop.f32.mrb[0].mxu0
      %v969 = vadd.f32 %v770, %v968
      %v970 = vpop.f32.mrb[0].mxu0
      %971 = vmatprep.mubr.f32.mxu0 %v724
      %972 = vmatmul.mubr.f32.gmra.mrb[0].mxu0 %v723
      %v973 = vpop.f32.mrb[0].mxu0
      %v974 = vadd.f32 %v770, %v973
      %v975 = vpop.f32.mrb[0].mxu0
      %976 = vmatprep.mubr.f32.mxu0 %v726
      %977 = vmatmul.mubr.f32.gmra.mrb[0].mxu0 %v725
      %v978 = vpop.f32.mrb[0].mxu0
      %v979 = vadd.f32 %v770, %v978
      %v980 = vpop.f32.mrb[0].mxu0
      %981 = vmatprep.mubr.f32.mxu0 %v728
      %982 = vmatmul.mubr.f32.gmra.mrb[0].mxu0 %v727
      %v983 = vpop.f32.mrb[0].mxu0
      %v984 = vadd.f32 %v770, %v983
      %v985 = vpop.f32.mrb[0].mxu0
      %986 = vmatprep.mubr.f32.mxu0 %v730
      %987 = vmatmul.mubr.f32.gmra.mrb[0].mxu0 %v729
      %v988 = vpop.f32.mrb[0].mxu0
      %v989 = vadd.f32 %v770, %v988
      %v990 = vpop.f32.mrb[0].mxu0
      %991 = vmatprep.mubr.f32.mxu0 %v732
      %992 = vmatmul.mubr.f32.gmra.mrb[0].mxu0 %v731
      %v993 = vpop.f32.mrb[0].mxu0
      %v994 = vadd.f32 %v770, %v993
      %v995 = vpop.f32.mrb[0].mxu0
      %996 = vdwg.mxu0
      %v997 = vmax.f32 %v839, 0.0
      %v998 = vmax.f32 %v844, 0.0
      %v999 = vmax.f32 %v849, 0.0
      %v1000 = vmax.f32 %v854, 0.0
      %v1001 = vmax.f32 %v859, 0.0
      %v1002 = vmax.f32 %v864, 0.0
      %v1003 = vmax.f32 %v869, 0.0
      %v1004 = vmax.f32 %v874, 0.0
      %v1005 = vmax.f32 %v879, 0.0
      %v1006 = vmax.f32 %v884, 0.0
      %v1007 = vmax.f32 %v889, 0.0
      %v1008 = vmax.f32 %v894, 0.0
      %v1009 = vmax.f32 %v899, 0.0
      %v1010 = vmax.f32 %v904, 0.0
      %v1011 = vmax.f32 %v909, 0.0
      %v1012 = vmax.f32 %v914, 0.0
      %v1013 = vmax.f32 %v919, 0.0
      %v1014 = vmax.f32 %v924, 0.0
      %v1015 = vmax.f32 %v929, 0.0
      %v1016 = vmax.f32 %v934, 0.0
      %v1017 = vmax.f32 %v939, 0.0
      %v1018 = vmax.f32 %v944, 0.0
      %v1019 = vmax.f32 %v949, 0.0
      %v1020 = vmax.f32 %v954, 0.0
      %v1021 = vmax.f32 %v959, 0.0
      %v1022 = vmax.f32 %v964, 0.0
      %v1023 = vmax.f32 %v969, 0.0
      %v1024 = vmax.f32 %v974, 0.0
      %v1025 = vmax.f32 %v979, 0.0
      %v1026 = vmax.f32 %v984, 0.0
      %v1027 = vmax.f32 %v989, 0.0
      %v1028 = vmax.f32 %v994, 0.0
      %v1029 = vld [vmem:[%s5] sm:$0xff]
      %v1030 = vld [vmem:[%s5 + $0x8] sm:$0xff]
      %v1031 = vld [vmem:[%s5 + $0x10] sm:$0xff]
      %v1032 = vld [vmem:[%s5 + $0x18] sm:$0xff]
      %v1033 = vld [vmem:[%s5 + $0x20] sm:$0xff]
      %v1034 = vld [vmem:[%s5 + $0x28] sm:$0xff]
      %v1035 = vld [vmem:[%s5 + $0x30] sm:$0xff]
      %v1036 = vld [vmem:[%s5 + $0x38] sm:$0xff]
      %v1037 = vld [vmem:[%s5 + $0x40] sm:$0xff]
      %v1038 = vld [vmem:[%s5 + $0x48] sm:$0xff]
      %v1039 = vld [vmem:[%s5 + $0x50] sm:$0xff]
      %v1040 = vld [vmem:[%s5 + $0x58] sm:$0xff]
      %v1041 = vld [vmem:[%s5 + $0x60] sm:$0xff]
      %v1042 = vld [vmem:[%s5 + $0x68] sm:$0xff]
      %v1043 = vld [vmem:[%s5 + $0x70] sm:$0xff]
      %v1044 = vld [vmem:[%s5 + $0x78] sm:$0xff]
      %v1045 = vld [vmem:[%s6] sm:$0x1]
      %v1047 = vlaneseq
      %v1048 = vshrl.u32 %v1047, 7
      %v1049 = vsub.s32 0, %v1048
      %v1050 = vrot.slane %v1045, %v1049
      %1052 = vmatprep.subr.mxu0 0.0
      %1053 = vmatpush1.msra.mxu0 %v1029
      %1054 = vmatprep.subr.mxu0 0.0
      %1055 = vmatpush1.msra.mxu0 %v1030
      %1056 = vmatprep.subr.mxu0 0.0
      %1057 = vmatpush1.msra.mxu0 %v1031
      %1058 = vmatprep.subr.mxu0 0.0
      %1059 = vmatpush1.msra.mxu0 %v1032
      %1060 = vmatprep.subr.mxu0 0.0
      %1061 = vmatpush1.msra.mxu0 %v1033
      %1062 = vmatprep.subr.mxu0 0.0
      %1063 = vmatpush1.msra.mxu0 %v1034
      %1064 = vmatprep.subr.mxu0 0.0
      %1065 = vmatpush1.msra.mxu0 %v1035
      %1066 = vmatprep.subr.mxu0 0.0
      %1067 = vmatpush1.msra.mxu0 %v1036
      %1068 = vmatprep.subr.mxu0 0.0
      %1069 = vmatpush1.msra.mxu0 %v1037
      %1070 = vmatprep.subr.mxu0 0.0
      %1071 = vmatpush1.msra.mxu0 %v1038
      %1072 = vmatprep.subr.mxu0 0.0
      %1073 = vmatpush1.msra.mxu0 %v1039
      %1074 = vmatprep.subr.mxu0 0.0
      %1075 = vmatpush1.msra.mxu0 %v1040
      %1076 = vmatprep.subr.mxu0 0.0
      %1077 = vmatpush1.msra.mxu0 %v1041
      %1078 = vmatprep.subr.mxu0 0.0
      %1079 = vmatpush1.msra.mxu0 %v1042
      %1080 = vmatprep.subr.mxu0 0.0
      %1081 = vmatpush1.msra.mxu0 %v1043
      %1082 = vmatprep.subr.mxu0 0.0
      %1083 = vmatpush1.msra.mxu0 %v1044
      %1084 = vmatprep.subr.mxu0 0.0
      %1085 = vmatpush1.msra.mxu0 0.0
      %1086 = vmatprep.subr.mxu0 0.0
      %1087 = vmatpush1.msra.mxu0 0.0
      %1088 = vmatprep.subr.mxu0 0.0
      %1089 = vmatpush1.msra.mxu0 0.0
      %1090 = vmatprep.subr.mxu0 0.0
      %1091 = vmatpush1.msra.mxu0 0.0
      %1092 = vmatprep.subr.mxu0 0.0
      %1093 = vmatpush1.msra.mxu0 0.0
      %1094 = vmatprep.subr.mxu0 0.0
      %1095 = vmatpush1.msra.mxu0 0.0
      %1096 = vmatprep.subr.mxu0 0.0
      %1097 = vmatpush1.msra.mxu0 0.0
      %1098 = vmatprep.subr.mxu0 0.0
      %1099 = vmatpush1.msra.mxu0 0.0
      %1100 = vmatprep.subr.mxu0 0.0
      %1101 = vmatpush1.msra.mxu0 0.0
      %1102 = vmatprep.subr.mxu0 0.0
      %1103 = vmatpush1.msra.mxu0 0.0
      %1104 = vmatprep.subr.mxu0 0.0
      %1105 = vmatpush1.msra.mxu0 0.0
      %1106 = vmatprep.subr.mxu0 0.0
      %1107 = vmatpush1.msra.mxu0 0.0
      %1108 = vmatprep.subr.mxu0 0.0
      %1109 = vmatpush1.msra.mxu0 0.0
      %1110 = vmatprep.subr.mxu0 0.0
      %1111 = vmatpush1.msra.mxu0 0.0
      %1112 = vmatprep.subr.mxu0 0.0
      %1113 = vmatpush1.msra.mxu0 0.0
      %1114 = vmatprep.subr.mxu0 0.0
      %1115 = vmatpush1.msra.mxu0 0.0
      %1116 = vmatprep.mubr.f32.mxu0 0.0
      %1117 = vmatmul.mubr.f32.gmra.mrb[0].mxu0 %v997
      %v1118 = vpop.f32.mrb[0].mxu0
      %v1119 = vadd.f32 %v1050, %v1118
      %v1120 = vpop.f32.mrb[0].mxu0
      %1121 = vmatprep.mubr.f32.mxu0 0.0
      %1122 = vmatmul.mubr.f32.gmra.mrb[0].mxu0 %v998
      %v1123 = vpop.f32.mrb[0].mxu0
      %v1124 = vadd.f32 %v1050, %v1123
      %v1125 = vpop.f32.mrb[0].mxu0
      %1126 = vmatprep.mubr.f32.mxu0 0.0
      %1127 = vmatmul.mubr.f32.gmra.mrb[0].mxu0 %v999
      %v1128 = vpop.f32.mrb[0].mxu0
      %v1129 = vadd.f32 %v1050, %v1128
      %v1130 = vpop.f32.mrb[0].mxu0
      %1131 = vmatprep.mubr.f32.mxu0 0.0
      %1132 = vmatmul.mubr.f32.gmra.mrb[0].mxu0 %v1000
      %v1133 = vpop.f32.mrb[0].mxu0
      %v1134 = vadd.f32 %v1050, %v1133
      %v1135 = vpop.f32.mrb[0].mxu0
      %1136 = vmatprep.mubr.f32.mxu0 0.0
      %1137 = vmatmul.mubr.f32.gmra.mrb[0].mxu0 %v1001
      %v1138 = vpop.f32.mrb[0].mxu0
      %v1139 = vadd.f32 %v1050, %v1138
      %v1140 = vpop.f32.mrb[0].mxu0
      %1141 = vmatprep.mubr.f32.mxu0 0.0
      %1142 = vmatmul.mubr.f32.gmra.mrb[0].mxu0 %v1002
      %v1143 = vpop.f32.mrb[0].mxu0
      %v1144 = vadd.f32 %v1050, %v1143
      %v1145 = vpop.f32.mrb[0].mxu0
      %1146 = vmatprep.mubr.f32.mxu0 0.0
      %1147 = vmatmul.mubr.f32.gmra.mrb[0].mxu0 %v1003
      %v1148 = vpop.f32.mrb[0].mxu0
      %v1149 = vadd.f32 %v1050, %v1148
      %v1150 = vpop.f32.mrb[0].mxu0
      %1151 = vmatprep.mubr.f32.mxu0 0.0
      %1152 = vmatmul.mubr.f32.gmra.mrb[0].mxu0 %v1004
      %v1153 = vpop.f32.mrb[0].mxu0
      %v1154 = vadd.f32 %v1050, %v1153
      %v1155 = vpop.f32.mrb[0].mxu0
      %1156 = vmatprep.mubr.f32.mxu0 0.0
      %1157 = vmatmul.mubr.f32.gmra.mrb[0].mxu0 %v1005
      %v1158 = vpop.f32.mrb[0].mxu0
      %v1159 = vadd.f32 %v1050, %v1158
      %v1160 = vpop.f32.mrb[0].mxu0
      %1161 = vmatprep.mubr.f32.mxu0 0.0
      %1162 = vmatmul.mubr.f32.gmra.mrb[0].mxu0 %v1006
      %v1163 = vpop.f32.mrb[0].mxu0
      %v1164 = vadd.f32 %v1050, %v1163
      %v1165 = vpop.f32.mrb[0].mxu0
      %1166 = vmatprep.mubr.f32.mxu0 0.0
      %1167 = vmatmul.mubr.f32.gmra.mrb[0].mxu0 %v1007
      %v1168 = vpop.f32.mrb[0].mxu0
      %v1169 = vadd.f32 %v1050, %v1168
      %v1170 = vpop.f32.mrb[0].mxu0
      %1171 = vmatprep.mubr.f32.mxu0 0.0
      %1172 = vmatmul.mubr.f32.gmra.mrb[0].mxu0 %v1008
      %v1173 = vpop.f32.mrb[0].mxu0
      %v1174 = vadd.f32 %v1050, %v1173
      %v1175 = vpop.f32.mrb[0].mxu0
      %1176 = vmatprep.mubr.f32.mxu0 0.0
      %1177 = vmatmul.mubr.f32.gmra.mrb[0].mxu0 %v1009
      %v1178 = vpop.f32.mrb[0].mxu0
      %v1179 = vadd.f32 %v1050, %v1178
      %v1180 = vpop.f32.mrb[0].mxu0
      %1181 = vmatprep.mubr.f32.mxu0 0.0
      %1182 = vmatmul.mubr.f32.gmra.mrb[0].mxu0 %v1010
      %v1183 = vpop.f32.mrb[0].mxu0
      %v1184 = vadd.f32 %v1050, %v1183
      %v1185 = vpop.f32.mrb[0].mxu0
      %1186 = vmatprep.mubr.f32.mxu0 0.0
      %1187 = vmatmul.mubr.f32.gmra.mrb[0].mxu0 %v1011
      %v1188 = vpop.f32.mrb[0].mxu0
      %v1189 = vadd.f32 %v1050, %v1188
      %v1190 = vpop.f32.mrb[0].mxu0
      %1191 = vmatprep.mubr.f32.mxu0 0.0
      %1192 = vmatmul.mubr.f32.gmra.mrb[0].mxu0 %v1012
      %v1193 = vpop.f32.mrb[0].mxu0
      %v1194 = vadd.f32 %v1050, %v1193
      %v1195 = vpop.f32.mrb[0].mxu0
      %1196 = vmatprep.mubr.f32.mxu0 0.0
      %1197 = vmatmul.mubr.f32.gmra.mrb[0].mxu0 %v1013
      %v1198 = vpop.f32.mrb[0].mxu0
      %v1199 = vadd.f32 %v1050, %v1198
      %v1200 = vpop.f32.mrb[0].mxu0
      %1201 = vmatprep.mubr.f32.mxu0 0.0
      %1202 = vmatmul.mubr.f32.gmra.mrb[0].mxu0 %v1014
      %v1203 = vpop.f32.mrb[0].mxu0
      %v1204 = vadd.f32 %v1050, %v1203
      %v1205 = vpop.f32.mrb[0].mxu0
      %1206 = vmatprep.mubr.f32.mxu0 0.0
      %1207 = vmatmul.mubr.f32.gmra.mrb[0].mxu0 %v1015
      %v1208 = vpop.f32.mrb[0].mxu0
      %v1209 = vadd.f32 %v1050, %v1208
      %v1210 = vpop.f32.mrb[0].mxu0
      %1211 = vmatprep.mubr.f32.mxu0 0.0
      %1212 = vmatmul.mubr.f32.gmra.mrb[0].mxu0 %v1016
      %v1213 = vpop.f32.mrb[0].mxu0
      %v1214 = vadd.f32 %v1050, %v1213
      %v1215 = vpop.f32.mrb[0].mxu0
      %1216 = vmatprep.mubr.f32.mxu0 0.0
      %1217 = vmatmul.mubr.f32.gmra.mrb[0].mxu0 %v1017
      %v1218 = vpop.f32.mrb[0].mxu0
      %v1219 = vadd.f32 %v1050, %v1218
      %v1220 = vpop.f32.mrb[0].mxu0
      %1221 = vmatprep.mubr.f32.mxu0 0.0
      %1222 = vmatmul.mubr.f32.gmra.mrb[0].mxu0 %v1018
      %v1223 = vpop.f32.mrb[0].mxu0
      %v1224 = vadd.f32 %v1050, %v1223
      %v1225 = vpop.f32.mrb[0].mxu0
      %1226 = vmatprep.mubr.f32.mxu0 0.0
      %1227 = vmatmul.mubr.f32.gmra.mrb[0].mxu0 %v1019
      %v1228 = vpop.f32.mrb[0].mxu0
      %v1229 = vadd.f32 %v1050, %v1228
      %v1230 = vpop.f32.mrb[0].mxu0
      %1231 = vmatprep.mubr.f32.mxu0 0.0
      %1232 = vmatmul.mubr.f32.gmra.mrb[0].mxu0 %v1020
      %v1233 = vpop.f32.mrb[0].mxu0
      %v1234 = vadd.f32 %v1050, %v1233
      %v1235 = vpop.f32.mrb[0].mxu0
      %1236 = vmatprep.mubr.f32.mxu0 0.0
      %1237 = vmatmul.mubr.f32.gmra.mrb[0].mxu0 %v1021
      %v1238 = vpop.f32.mrb[0].mxu0
      %v1239 = vadd.f32 %v1050, %v1238
      %v1240 = vpop.f32.mrb[0].mxu0
      %1241 = vmatprep.mubr.f32.mxu0 0.0
      %1242 = vmatmul.mubr.f32.gmra.mrb[0].mxu0 %v1022
      %v1243 = vpop.f32.mrb[0].mxu0
      %v1244 = vadd.f32 %v1050, %v1243
      %v1245 = vpop.f32.mrb[0].mxu0
      %1246 = vmatprep.mubr.f32.mxu0 0.0
      %1247 = vmatmul.mubr.f32.gmra.mrb[0].mxu0 %v1023
      %v1248 = vpop.f32.mrb[0].mxu0
      %v1249 = vadd.f32 %v1050, %v1248
      %v1250 = vpop.f32.mrb[0].mxu0
      %1251 = vmatprep.mubr.f32.mxu0 0.0
      %1252 = vmatmul.mubr.f32.gmra.mrb[0].mxu0 %v1024
      %v1253 = vpop.f32.mrb[0].mxu0
      %v1254 = vadd.f32 %v1050, %v1253
      %v1255 = vpop.f32.mrb[0].mxu0
      %1256 = vmatprep.mubr.f32.mxu0 0.0
      %1257 = vmatmul.mubr.f32.gmra.mrb[0].mxu0 %v1025
      %v1258 = vpop.f32.mrb[0].mxu0
      %v1259 = vadd.f32 %v1050, %v1258
      %v1260 = vpop.f32.mrb[0].mxu0
      %1261 = vmatprep.mubr.f32.mxu0 0.0
      %1262 = vmatmul.mubr.f32.gmra.mrb[0].mxu0 %v1026
      %v1263 = vpop.f32.mrb[0].mxu0
      %v1264 = vadd.f32 %v1050, %v1263
      %v1265 = vpop.f32.mrb[0].mxu0
      %1266 = vmatprep.mubr.f32.mxu0 0.0
      %1267 = vmatmul.mubr.f32.gmra.mrb[0].mxu0 %v1027
      %v1268 = vpop.f32.mrb[0].mxu0
      %v1269 = vadd.f32 %v1050, %v1268
      %v1270 = vpop.f32.mrb[0].mxu0
      %1271 = vmatprep.mubr.f32.mxu0 0.0
      %1272 = vmatmul.mubr.f32.gmra.mrb[0].mxu0 %v1028
      %v1273 = vpop.f32.mrb[0].mxu0
      %v1274 = vadd.f32 %v1050, %v1273
      %v1275 = vpop.f32.mrb[0].mxu0
      %1276 = vdwg.mxu0
      %v1277 = vmax.f32 %v1119, 0.0
      %v1278 = vmax.f32 %v1124, 0.0
      %v1279 = vmax.f32 %v1129, 0.0
      %v1280 = vmax.f32 %v1134, 0.0
      %v1281 = vmax.f32 %v1139, 0.0
      %v1282 = vmax.f32 %v1144, 0.0
      %v1283 = vmax.f32 %v1149, 0.0
      %v1284 = vmax.f32 %v1154, 0.0
      %v1285 = vmax.f32 %v1159, 0.0
      %v1286 = vmax.f32 %v1164, 0.0
      %v1287 = vmax.f32 %v1169, 0.0
      %v1288 = vmax.f32 %v1174, 0.0
      %v1289 = vmax.f32 %v1179, 0.0
      %v1290 = vmax.f32 %v1184, 0.0
      %v1291 = vmax.f32 %v1189, 0.0
      %v1292 = vmax.f32 %v1194, 0.0
      %v1293 = vmax.f32 %v1199, 0.0
      %v1294 = vmax.f32 %v1204, 0.0
      %v1295 = vmax.f32 %v1209, 0.0
      %v1296 = vmax.f32 %v1214, 0.0
      %v1297 = vmax.f32 %v1219, 0.0
      %v1298 = vmax.f32 %v1224, 0.0
      %v1299 = vmax.f32 %v1229, 0.0
      %v1300 = vmax.f32 %v1234, 0.0
      %v1301 = vmax.f32 %v1239, 0.0
      %v1302 = vmax.f32 %v1244, 0.0
      %v1303 = vmax.f32 %v1249, 0.0
      %v1304 = vmax.f32 %v1254, 0.0
      %v1305 = vmax.f32 %v1259, 0.0
      %v1306 = vmax.f32 %v1264, 0.0
      %v1307 = vmax.f32 %v1269, 0.0
      %v1308 = vmax.f32 %v1274, 0.0
      %v1309 = vld [vmem:[%s7] sm:$0xff]
      %v1310 = vld [vmem:[%s7 + $0x8] sm:$0xff]
      %v1311 = vld [vmem:[%s7 + $0x10] sm:$0xff]
      %v1312 = vld [vmem:[%s7 + $0x18] sm:$0xff]
      %v1313 = vld [vmem:[%s7 + $0x20] sm:$0xff]
      %v1314 = vld [vmem:[%s7 + $0x28] sm:$0xff]
      %v1315 = vld [vmem:[%s7 + $0x30] sm:$0xff]
      %v1316 = vld [vmem:[%s7 + $0x38] sm:$0xff]
      %v1317 = vld [vmem:[%s8] sm:$0x1]
      %v1319 = vlaneseq
      %v1320 = vshrl.u32 %v1319, 7
      %v1321 = vsub.s32 0, %v1320
      %v1322 = vrot.slane %v1317, %v1321
      %vm1324 = vcmask 523264
      %v1326 = vsel %vm1324, %v1277, 0
      %v1329 = vsel %vm1324, %v1278, 0
      %v1332 = vsel %vm1324, %v1279, 0
      %v1335 = vsel %vm1324, %v1280, 0
      %v1338 = vsel %vm1324, %v1281, 0
      %v1341 = vsel %vm1324, %v1282, 0
      %v1344 = vsel %vm1324, %v1283, 0
      %v1347 = vsel %vm1324, %v1284, 0
      %v1350 = vsel %vm1324, %v1285, 0
      %v1353 = vsel %vm1324, %v1286, 0
      %v1356 = vsel %vm1324, %v1287, 0
      %v1359 = vsel %vm1324, %v1288, 0
      %v1362 = vsel %vm1324, %v1289, 0
      %v1365 = vsel %vm1324, %v1290, 0
      %v1368 = vsel %vm1324, %v1291, 0
      %v1371 = vsel %vm1324, %v1292, 0
      %v1374 = vsel %vm1324, %v1293, 0
      %v1377 = vsel %vm1324, %v1294, 0
      %v1380 = vsel %vm1324, %v1295, 0
      %v1383 = vsel %vm1324, %v1296, 0
      %v1386 = vsel %vm1324, %v1297, 0
      %v1389 = vsel %vm1324, %v1298, 0
      %v1392 = vsel %vm1324, %v1299, 0
      %v1395 = vsel %vm1324, %v1300, 0
      %v1398 = vsel %vm1324, %v1301, 0
      %v1401 = vsel %vm1324, %v1302, 0
      %v1404 = vsel %vm1324, %v1303, 0
      %v1407 = vsel %vm1324, %v1304, 0
      %v1410 = vsel %vm1324, %v1305, 0
      %v1413 = vsel %vm1324, %v1306, 0
      %v1416 = vsel %vm1324, %v1307, 0
      %v1419 = vsel %vm1324, %v1308, 0
      %1421 = vmatprep.subr.mxu0 0.0
      %1422 = vmatpush1.msra.mxu0 %v1309
      %1423 = vmatprep.subr.mxu0 0.0
      %1424 = vmatpush1.msra.mxu0 %v1310
      %1425 = vmatprep.subr.mxu0 0.0
      %1426 = vmatpush1.msra.mxu0 %v1311
      %1427 = vmatprep.subr.mxu0 0.0
      %1428 = vmatpush1.msra.mxu0 %v1312
      %1429 = vmatprep.subr.mxu0 0.0
      %1430 = vmatpush1.msra.mxu0 %v1313
      %1431 = vmatprep.subr.mxu0 0.0
      %1432 = vmatpush1.msra.mxu0 %v1314
      %1433 = vmatprep.subr.mxu0 0.0
      %1434 = vmatpush1.msra.mxu0 %v1315
      %1435 = vmatprep.subr.mxu0 0.0
      %1436 = vmatpush1.msra.mxu0 %v1316
      %1437 = vmatprep.subr.mxu0 0.0
      %1438 = vmatpush1.msra.mxu0 0.0
      %1439 = vmatprep.subr.mxu0 0.0
      %1440 = vmatpush1.msra.mxu0 0.0
      %1441 = vmatprep.subr.mxu0 0.0
      %1442 = vmatpush1.msra.mxu0 0.0
      %1443 = vmatprep.subr.mxu0 0.0
      %1444 = vmatpush1.msra.mxu0 0.0
      %1445 = vmatprep.subr.mxu0 0.0
      %1446 = vmatpush1.msra.mxu0 0.0
      %1447 = vmatprep.subr.mxu0 0.0
      %1448 = vmatpush1.msra.mxu0 0.0
      %1449 = vmatprep.subr.mxu0 0.0
      %1450 = vmatpush1.msra.mxu0 0.0
      %1451 = vmatprep.subr.mxu0 0.0
      %1452 = vmatpush1.msra.mxu0 0.0
      %1453 = vmatprep.subr.mxu0 0.0
      %1454 = vmatpush1.msra.mxu0 0.0
      %1455 = vmatprep.subr.mxu0 0.0
      %1456 = vmatpush1.msra.mxu0 0.0
      %1457 = vmatprep.subr.mxu0 0.0
      %1458 = vmatpush1.msra.mxu0 0.0
      %1459 = vmatprep.subr.mxu0 0.0
      %1460 = vmatpush1.msra.mxu0 0.0
      %1461 = vmatprep.subr.mxu0 0.0
      %1462 = vmatpush1.msra.mxu0 0.0
      %1463 = vmatprep.subr.mxu0 0.0
      %1464 = vmatpush1.msra.mxu0 0.0
      %1465 = vmatprep.subr.mxu0 0.0
      %1466 = vmatpush1.msra.mxu0 0.0
      %1467 = vmatprep.subr.mxu0 0.0
      %1468 = vmatpush1.msra.mxu0 0.0
      %1469 = vmatprep.subr.mxu0 0.0
      %1470 = vmatpush1.msra.mxu0 0.0
      %1471 = vmatprep.subr.mxu0 0.0
      %1472 = vmatpush1.msra.mxu0 0.0
      %1473 = vmatprep.subr.mxu0 0.0
      %1474 = vmatpush1.msra.mxu0 0.0
      %1475 = vmatprep.subr.mxu0 0.0
      %1476 = vmatpush1.msra.mxu0 0.0
      %1477 = vmatprep.subr.mxu0 0.0
      %1478 = vmatpush1.msra.mxu0 0.0
      %1479 = vmatprep.subr.mxu0 0.0
      %1480 = vmatpush1.msra.mxu0 0.0
      %1481 = vmatprep.subr.mxu0 0.0
      %1482 = vmatpush1.msra.mxu0 0.0
      %1483 = vmatprep.subr.mxu0 0.0
      %1484 = vmatpush1.msra.mxu0 0.0
      %1485 = vmatprep.mubr.f32.mxu0 0.0
      %1486 = vmatmul.mubr.f32.gmra.mrb[0].mxu0 %v1326
      %v1487 = vpop.f32.mrb[0].mxu0
      %v1488 = vadd.f32 %v1322, %v1487
      %v1489 = vpop.f32.mrb[0].mxu0
      %1490 = vmatprep.mubr.f32.mxu0 0.0
      %1491 = vmatmul.mubr.f32.gmra.mrb[0].mxu0 %v1329
      %v1492 = vpop.f32.mrb[0].mxu0
      %v1493 = vadd.f32 %v1322, %v1492
      %v1494 = vpop.f32.mrb[0].mxu0
      %1495 = vmatprep.mubr.f32.mxu0 0.0
      %1496 = vmatmul.mubr.f32.gmra.mrb[0].mxu0 %v1332
      %v1497 = vpop.f32.mrb[0].mxu0
      %v1498 = vadd.f32 %v1322, %v1497
      %v1499 = vpop.f32.mrb[0].mxu0
      %1500 = vmatprep.mubr.f32.mxu0 0.0
      %1501 = vmatmul.mubr.f32.gmra.mrb[0].mxu0 %v1335
      %v1502 = vpop.f32.mrb[0].mxu0
      %v1503 = vadd.f32 %v1322, %v1502
      %v1504 = vpop.f32.mrb[0].mxu0
      %1505 = vmatprep.mubr.f32.mxu0 0.0
      %1506 = vmatmul.mubr.f32.gmra.mrb[0].mxu0 %v1338
      %v1507 = vpop.f32.mrb[0].mxu0
      %v1508 = vadd.f32 %v1322, %v1507
      %v1509 = vpop.f32.mrb[0].mxu0
      %1510 = vmatprep.mubr.f32.mxu0 0.0
      %1511 = vmatmul.mubr.f32.gmra.mrb[0].mxu0 %v1341
      %v1512 = vpop.f32.mrb[0].mxu0
      %v1513 = vadd.f32 %v1322, %v1512
      %v1514 = vpop.f32.mrb[0].mxu0
      %1515 = vmatprep.mubr.f32.mxu0 0.0
      %1516 = vmatmul.mubr.f32.gmra.mrb[0].mxu0 %v1344
      %v1517 = vpop.f32.mrb[0].mxu0
      %v1518 = vadd.f32 %v1322, %v1517
      %v1519 = vpop.f32.mrb[0].mxu0
      %1520 = vmatprep.mubr.f32.mxu0 0.0
      %1521 = vmatmul.mubr.f32.gmra.mrb[0].mxu0 %v1347
      %v1522 = vpop.f32.mrb[0].mxu0
      %v1523 = vadd.f32 %v1322, %v1522
      %v1524 = vpop.f32.mrb[0].mxu0
      %1525 = vmatprep.mubr.f32.mxu0 0.0
      %1526 = vmatmul.mubr.f32.gmra.mrb[0].mxu0 %v1350
      %v1527 = vpop.f32.mrb[0].mxu0
      %v1528 = vadd.f32 %v1322, %v1527
      %v1529 = vpop.f32.mrb[0].mxu0
      %1530 = vmatprep.mubr.f32.mxu0 0.0
      %1531 = vmatmul.mubr.f32.gmra.mrb[0].mxu0 %v1353
      %v1532 = vpop.f32.mrb[0].mxu0
      %v1533 = vadd.f32 %v1322, %v1532
      %v1534 = vpop.f32.mrb[0].mxu0
      %1535 = vmatprep.mubr.f32.mxu0 0.0
      %1536 = vmatmul.mubr.f32.gmra.mrb[0].mxu0 %v1356
      %v1537 = vpop.f32.mrb[0].mxu0
      %v1538 = vadd.f32 %v1322, %v1537
      %v1539 = vpop.f32.mrb[0].mxu0
      %1540 = vmatprep.mubr.f32.mxu0 0.0
      %1541 = vmatmul.mubr.f32.gmra.mrb[0].mxu0 %v1359
      %v1542 = vpop.f32.mrb[0].mxu0
      %v1543 = vadd.f32 %v1322, %v1542
      %v1544 = vpop.f32.mrb[0].mxu0
      %1545 = vmatprep.mubr.f32.mxu0 0.0
      %1546 = vmatmul.mubr.f32.gmra.mrb[0].mxu0 %v1362
      %v1547 = vpop.f32.mrb[0].mxu0
      %v1548 = vadd.f32 %v1322, %v1547
      %v1549 = vpop.f32.mrb[0].mxu0
      %1550 = vmatprep.mubr.f32.mxu0 0.0
      %1551 = vmatmul.mubr.f32.gmra.mrb[0].mxu0 %v1365
      %v1552 = vpop.f32.mrb[0].mxu0
      %v1553 = vadd.f32 %v1322, %v1552
      %v1554 = vpop.f32.mrb[0].mxu0
      %1555 = vmatprep.mubr.f32.mxu0 0.0
      %1556 = vmatmul.mubr.f32.gmra.mrb[0].mxu0 %v1368
      %v1557 = vpop.f32.mrb[0].mxu0
      %v1558 = vadd.f32 %v1322, %v1557
      %v1559 = vpop.f32.mrb[0].mxu0
      %1560 = vmatprep.mubr.f32.mxu0 0.0
      %1561 = vmatmul.mubr.f32.gmra.mrb[0].mxu0 %v1371
      %v1562 = vpop.f32.mrb[0].mxu0
      %v1563 = vadd.f32 %v1322, %v1562
      %v1564 = vpop.f32.mrb[0].mxu0
      %1565 = vmatprep.mubr.f32.mxu0 0.0
      %1566 = vmatmul.mubr.f32.gmra.mrb[0].mxu0 %v1374
      %v1567 = vpop.f32.mrb[0].mxu0
      %v1568 = vadd.f32 %v1322, %v1567
      %v1569 = vpop.f32.mrb[0].mxu0
      %1570 = vmatprep.mubr.f32.mxu0 0.0
      %1571 = vmatmul.mubr.f32.gmra.mrb[0].mxu0 %v1377
      %v1572 = vpop.f32.mrb[0].mxu0
      %v1573 = vadd.f32 %v1322, %v1572
      %v1574 = vpop.f32.mrb[0].mxu0
      %1575 = vmatprep.mubr.f32.mxu0 0.0
      %1576 = vmatmul.mubr.f32.gmra.mrb[0].mxu0 %v1380
      %v1577 = vpop.f32.mrb[0].mxu0
      %v1578 = vadd.f32 %v1322, %v1577
      %v1579 = vpop.f32.mrb[0].mxu0
      %1580 = vmatprep.mubr.f32.mxu0 0.0
      %1581 = vmatmul.mubr.f32.gmra.mrb[0].mxu0 %v1383
      %v1582 = vpop.f32.mrb[0].mxu0
      %v1583 = vadd.f32 %v1322, %v1582
      %v1584 = vpop.f32.mrb[0].mxu0
      %1585 = vmatprep.mubr.f32.mxu0 0.0
      %1586 = vmatmul.mubr.f32.gmra.mrb[0].mxu0 %v1386
      %v1587 = vpop.f32.mrb[0].mxu0
      %v1588 = vadd.f32 %v1322, %v1587
      %v1589 = vpop.f32.mrb[0].mxu0
      %1590 = vmatprep.mubr.f32.mxu0 0.0
      %1591 = vmatmul.mubr.f32.gmra.mrb[0].mxu0 %v1389
      %v1592 = vpop.f32.mrb[0].mxu0
      %v1593 = vadd.f32 %v1322, %v1592
      %v1594 = vpop.f32.mrb[0].mxu0
      %1595 = vmatprep.mubr.f32.mxu0 0.0
      %1596 = vmatmul.mubr.f32.gmra.mrb[0].mxu0 %v1392
      %v1597 = vpop.f32.mrb[0].mxu0
      %v1598 = vadd.f32 %v1322, %v1597
      %v1599 = vpop.f32.mrb[0].mxu0
      %1600 = vmatprep.mubr.f32.mxu0 0.0
      %1601 = vmatmul.mubr.f32.gmra.mrb[0].mxu0 %v1395
      %v1602 = vpop.f32.mrb[0].mxu0
      %v1603 = vadd.f32 %v1322, %v1602
      %v1604 = vpop.f32.mrb[0].mxu0
      %1605 = vmatprep.mubr.f32.mxu0 0.0
      %1606 = vmatmul.mubr.f32.gmra.mrb[0].mxu0 %v1398
      %v1607 = vpop.f32.mrb[0].mxu0
      %v1608 = vadd.f32 %v1322, %v1607
      %v1609 = vpop.f32.mrb[0].mxu0
      %1610 = vmatprep.mubr.f32.mxu0 0.0
      %1611 = vmatmul.mubr.f32.gmra.mrb[0].mxu0 %v1401
      %v1612 = vpop.f32.mrb[0].mxu0
      %v1613 = vadd.f32 %v1322, %v1612
      %v1614 = vpop.f32.mrb[0].mxu0
      %1615 = vmatprep.mubr.f32.mxu0 0.0
      %1616 = vmatmul.mubr.f32.gmra.mrb[0].mxu0 %v1404
      %v1617 = vpop.f32.mrb[0].mxu0
      %v1618 = vadd.f32 %v1322, %v1617
      %v1619 = vpop.f32.mrb[0].mxu0
      %1620 = vmatprep.mubr.f32.mxu0 0.0
      %1621 = vmatmul.mubr.f32.gmra.mrb[0].mxu0 %v1407
      %v1622 = vpop.f32.mrb[0].mxu0
      %v1623 = vadd.f32 %v1322, %v1622
      %v1624 = vpop.f32.mrb[0].mxu0
      %1625 = vmatprep.mubr.f32.mxu0 0.0
      %1626 = vmatmul.mubr.f32.gmra.mrb[0].mxu0 %v1410
      %v1627 = vpop.f32.mrb[0].mxu0
      %v1628 = vadd.f32 %v1322, %v1627
      %v1629 = vpop.f32.mrb[0].mxu0
      %1630 = vmatprep.mubr.f32.mxu0 0.0
      %1631 = vmatmul.mubr.f32.gmra.mrb[0].mxu0 %v1413
      %v1632 = vpop.f32.mrb[0].mxu0
      %v1633 = vadd.f32 %v1322, %v1632
      %v1634 = vpop.f32.mrb[0].mxu0
      %1635 = vmatprep.mubr.f32.mxu0 0.0
      %1636 = vmatmul.mubr.f32.gmra.mrb[0].mxu0 %v1416
      %v1637 = vpop.f32.mrb[0].mxu0
      %v1638 = vadd.f32 %v1322, %v1637
      %v1639 = vpop.f32.mrb[0].mxu0
      %1640 = vmatprep.mubr.f32.mxu0 0.0
      %1641 = vmatmul.mubr.f32.gmra.mrb[0].mxu0 %v1419
      %v1642 = vpop.f32.mrb[0].mxu0
      %v1643 = vadd.f32 %v1322, %v1642
      %v1644 = vpop.f32.mrb[0].mxu0
      %1645 = vdwg.mxu0
      %1646 = vmax.xlane.f32.xlu0 %v1488
      %v1647 = vpop.xlane.xlu0 %1646
      %1648 = vmax.xlane.f32.xlu0 %v1493
      %v1649 = vpop.xlane.xlu0 %1648
      %1650 = vmax.xlane.f32.xlu0 %v1498
      %v1651 = vpop.xlane.xlu0 %1650
      %1652 = vmax.xlane.f32.xlu0 %v1503
      %v1653 = vpop.xlane.xlu0 %1652
      %1654 = vmax.xlane.f32.xlu0 %v1508
      %v1655 = vpop.xlane.xlu0 %1654
      %1656 = vmax.xlane.f32.xlu0 %v1513
      %v1657 = vpop.xlane.xlu0 %1656
      %1658 = vmax.xlane.f32.xlu0 %v1518
      %v1659 = vpop.xlane.xlu0 %1658
      %1660 = vmax.xlane.f32.xlu0 %v1523
      %v1661 = vpop.xlane.xlu0 %1660
      %1662 = vmax.xlane.f32.xlu0 %v1528
      %v1663 = vpop.xlane.xlu0 %1662
      %1664 = vmax.xlane.f32.xlu0 %v1533
      %v1665 = vpop.xlane.xlu0 %1664
      %1666 = vmax.xlane.f32.xlu0 %v1538
      %v1667 = vpop.xlane.xlu0 %1666
      %1668 = vmax.xlane.f32.xlu0 %v1543
      %v1669 = vpop.xlane.xlu0 %1668
      %1670 = vmax.xlane.f32.xlu0 %v1548
      %v1671 = vpop.xlane.xlu0 %1670
      %1672 = vmax.xlane.f32.xlu0 %v1553
      %v1673 = vpop.xlane.xlu0 %1672
      %1674 = vmax.xlane.f32.xlu0 %v1558
      %v1675 = vpop.xlane.xlu0 %1674
      %1676 = vmax.xlane.f32.xlu0 %v1563
      %v1677 = vpop.xlane.xlu0 %1676
      %1678 = vmax.xlane.f32.xlu0 %v1568
      %v1679 = vpop.xlane.xlu0 %1678
      %1680 = vmax.xlane.f32.xlu0 %v1573
      %v1681 = vpop.xlane.xlu0 %1680
      %1682 = vmax.xlane.f32.xlu0 %v1578
      %v1683 = vpop.xlane.xlu0 %1682
      %1684 = vmax.xlane.f32.xlu0 %v1583
      %v1685 = vpop.xlane.xlu0 %1684
      %1686 = vmax.xlane.f32.xlu0 %v1588
      %v1687 = vpop.xlane.xlu0 %1686
      %1688 = vmax.xlane.f32.xlu0 %v1593
      %v1689 = vpop.xlane.xlu0 %1688
      %1690 = vmax.xlane.f32.xlu0 %v1598
      %v1691 = vpop.xlane.xlu0 %1690
      %1692 = vmax.xlane.f32.xlu0 %v1603
      %v1693 = vpop.xlane.xlu0 %1692
      %1694 = vmax.xlane.f32.xlu0 %v1608
      %v1695 = vpop.xlane.xlu0 %1694
      %1696 = vmax.xlane.f32.xlu0 %v1613
      %v1697 = vpop.xlane.xlu0 %1696
      %1698 = vmax.xlane.f32.xlu0 %v1618
      %v1699 = vpop.xlane.xlu0 %1698
      %1700 = vmax.xlane.f32.xlu0 %v1623
      %v1701 = vpop.xlane.xlu0 %1700
      %1702 = vmax.xlane.f32.xlu0 %v1628
      %v1703 = vpop.xlane.xlu0 %1702
      %1704 = vmax.xlane.f32.xlu0 %v1633
      %v1705 = vpop.xlane.xlu0 %1704
      %1706 = vmax.xlane.f32.xlu0 %v1638
      %v1707 = vpop.xlane.xlu0 %1706
      %1708 = vmax.xlane.f32.xlu0 %v1643
      %v1709 = vpop.xlane.xlu0 %1708
      %v1710 = vsub.f32 %v1488, %v1647
      %v1711 = vsub.f32 %v1493, %v1649
      %v1712 = vsub.f32 %v1498, %v1651
      %v1713 = vsub.f32 %v1503, %v1653
      %v1714 = vsub.f32 %v1508, %v1655
      %v1715 = vsub.f32 %v1513, %v1657
      %v1716 = vsub.f32 %v1518, %v1659
      %v1717 = vsub.f32 %v1523, %v1661
      %v1718 = vsub.f32 %v1528, %v1663
      %v1719 = vsub.f32 %v1533, %v1665
      %v1720 = vsub.f32 %v1538, %v1667
      %v1721 = vsub.f32 %v1543, %v1669
      %v1722 = vsub.f32 %v1548, %v1671
      %v1723 = vsub.f32 %v1553, %v1673
      %v1724 = vsub.f32 %v1558, %v1675
      %v1725 = vsub.f32 %v1563, %v1677
      %v1726 = vsub.f32 %v1568, %v1679
      %v1727 = vsub.f32 %v1573, %v1681
      %v1728 = vsub.f32 %v1578, %v1683
      %v1729 = vsub.f32 %v1583, %v1685
      %v1730 = vsub.f32 %v1588, %v1687
      %v1731 = vsub.f32 %v1593, %v1689
      %v1732 = vsub.f32 %v1598, %v1691
      %v1733 = vsub.f32 %v1603, %v1693
      %v1734 = vsub.f32 %v1608, %v1695
      %v1735 = vsub.f32 %v1613, %v1697
      %v1736 = vsub.f32 %v1618, %v1699
      %v1737 = vsub.f32 %v1623, %v1701
      %v1738 = vsub.f32 %v1628, %v1703
      %v1739 = vsub.f32 %v1633, %v1705
      %v1740 = vsub.f32 %v1638, %v1707
      %v1741 = vsub.f32 %v1643, %v1709
      %v1742 = vmul.f32 %v1710, 1.442695
      %v1743 = vpow.pop %v1742
      %v1744 = vmul.f32 %v1711, 1.442695
      %v1745 = vpow.pop %v1744
      %v1746 = vmul.f32 %v1712, 1.442695
      %v1747 = vpow.pop %v1746
      %v1748 = vmul.f32 %v1713, 1.442695
      %v1749 = vpow.pop %v1748
      %v1750 = vmul.f32 %v1714, 1.442695
      %v1751 = vpow.pop %v1750
      %v1752 = vmul.f32 %v1715, 1.442695
      %v1753 = vpow.pop %v1752
      %v1754 = vmul.f32 %v1716, 1.442695
      %v1755 = vpow.pop %v1754
      %v1756 = vmul.f32 %v1717, 1.442695
      %v1757 = vpow.pop %v1756
      %v1758 = vmul.f32 %v1718, 1.442695
      %v1759 = vpow.pop %v1758
      %v1760 = vmul.f32 %v1719, 1.442695
      %v1761 = vpow.pop %v1760
      %v1762 = vmul.f32 %v1720, 1.442695
      %v1763 = vpow.pop %v1762
      %v1764 = vmul.f32 %v1721, 1.442695
      %v1765 = vpow.pop %v1764
      %v1766 = vmul.f32 %v1722, 1.442695
      %v1767 = vpow.pop %v1766
      %v1768 = vmul.f32 %v1723, 1.442695
      %v1769 = vpow.pop %v1768
      %v1770 = vmul.f32 %v1724, 1.442695
      %v1771 = vpow.pop %v1770
      %v1772 = vmul.f32 %v1725, 1.442695
      %v1773 = vpow.pop %v1772
      %v1774 = vmul.f32 %v1726, 1.442695
      %v1775 = vpow.pop %v1774
      %v1776 = vmul.f32 %v1727, 1.442695
      %v1777 = vpow.pop %v1776
      %v1778 = vmul.f32 %v1728, 1.442695
      %v1779 = vpow.pop %v1778
      %v1780 = vmul.f32 %v1729, 1.442695
      %v1781 = vpow.pop %v1780
      %v1782 = vmul.f32 %v1730, 1.442695
      %v1783 = vpow.pop %v1782
      %v1784 = vmul.f32 %v1731, 1.442695
      %v1785 = vpow.pop %v1784
      %v1786 = vmul.f32 %v1732, 1.442695
      %v1787 = vpow.pop %v1786
      %v1788 = vmul.f32 %v1733, 1.442695
      %v1789 = vpow.pop %v1788
      %v1790 = vmul.f32 %v1734, 1.442695
      %v1791 = vpow.pop %v1790
      %v1792 = vmul.f32 %v1735, 1.442695
      %v1793 = vpow.pop %v1792
      %v1794 = vmul.f32 %v1736, 1.442695
      %v1795 = vpow.pop %v1794
      %v1796 = vmul.f32 %v1737, 1.442695
      %v1797 = vpow.pop %v1796
      %v1798 = vmul.f32 %v1738, 1.442695
      %v1799 = vpow.pop %v1798
      %v1800 = vmul.f32 %v1739, 1.442695
      %v1801 = vpow.pop %v1800
      %v1802 = vmul.f32 %v1740, 1.442695
      %v1803 = vpow.pop %v1802
      %v1804 = vmul.f32 %v1741, 1.442695
      %v1805 = vpow.pop %v1804
      %1806 = vadd.xlane.f32.xlu0 %v1743
      %v1807 = vpop.xlane.xlu0 %1806
      %1808 = vadd.xlane.f32.xlu0 %v1745
      %v1809 = vpop.xlane.xlu0 %1808
      %1810 = vadd.xlane.f32.xlu0 %v1747
      %v1811 = vpop.xlane.xlu0 %1810
      %1812 = vadd.xlane.f32.xlu0 %v1749
      %v1813 = vpop.xlane.xlu0 %1812
      %1814 = vadd.xlane.f32.xlu0 %v1751
      %v1815 = vpop.xlane.xlu0 %1814
      %1816 = vadd.xlane.f32.xlu0 %v1753
      %v1817 = vpop.xlane.xlu0 %1816
      %1818 = vadd.xlane.f32.xlu0 %v1755
      %v1819 = vpop.xlane.xlu0 %1818
      %1820 = vadd.xlane.f32.xlu0 %v1757
      %v1821 = vpop.xlane.xlu0 %1820
      %1822 = vadd.xlane.f32.xlu0 %v1759
      %v1823 = vpop.xlane.xlu0 %1822
      %1824 = vadd.xlane.f32.xlu0 %v1761
      %v1825 = vpop.xlane.xlu0 %1824
      %1826 = vadd.xlane.f32.xlu0 %v1763
      %v1827 = vpop.xlane.xlu0 %1826
      %1828 = vadd.xlane.f32.xlu0 %v1765
      %v1829 = vpop.xlane.xlu0 %1828
      %1830 = vadd.xlane.f32.xlu0 %v1767
      %v1831 = vpop.xlane.xlu0 %1830
      %1832 = vadd.xlane.f32.xlu0 %v1769
      %v1833 = vpop.xlane.xlu0 %1832
      %1834 = vadd.xlane.f32.xlu0 %v1771
      %v1835 = vpop.xlane.xlu0 %1834
      %1836 = vadd.xlane.f32.xlu0 %v1773
      %v1837 = vpop.xlane.xlu0 %1836
      %1838 = vadd.xlane.f32.xlu0 %v1775
      %v1839 = vpop.xlane.xlu0 %1838
      %1840 = vadd.xlane.f32.xlu0 %v1777
      %v1841 = vpop.xlane.xlu0 %1840
      %1842 = vadd.xlane.f32.xlu0 %v1779
      %v1843 = vpop.xlane.xlu0 %1842
      %1844 = vadd.xlane.f32.xlu0 %v1781
      %v1845 = vpop.xlane.xlu0 %1844
      %1846 = vadd.xlane.f32.xlu0 %v1783
      %v1847 = vpop.xlane.xlu0 %1846
      %1848 = vadd.xlane.f32.xlu0 %v1785
      %v1849 = vpop.xlane.xlu0 %1848
      %1850 = vadd.xlane.f32.xlu0 %v1787
      %v1851 = vpop.xlane.xlu0 %1850
      %1852 = vadd.xlane.f32.xlu0 %v1789
      %v1853 = vpop.xlane.xlu0 %1852
      %1854 = vadd.xlane.f32.xlu0 %v1791
      %v1855 = vpop.xlane.xlu0 %1854
      %1856 = vadd.xlane.f32.xlu0 %v1793
      %v1857 = vpop.xlane.xlu0 %1856
      %1858 = vadd.xlane.f32.xlu0 %v1795
      %v1859 = vpop.xlane.xlu0 %1858
      %1860 = vadd.xlane.f32.xlu0 %v1797
      %v1861 = vpop.xlane.xlu0 %1860
      %1862 = vadd.xlane.f32.xlu0 %v1799
      %v1863 = vpop.xlane.xlu0 %1862
      %1864 = vadd.xlane.f32.xlu0 %v1801
      %v1865 = vpop.xlane.xlu0 %1864
      %1866 = vadd.xlane.f32.xlu0 %v1803
      %v1867 = vpop.xlane.xlu0 %1866
      %1868 = vadd.xlane.f32.xlu0 %v1805
      %v1869 = vpop.xlane.xlu0 %1868
      %v1870 = vrcp.pop %v1807
      %v1871 = vrcp.pop %v1809
      %v1872 = vrcp.pop %v1811
      %v1873 = vrcp.pop %v1813
      %v1874 = vrcp.pop %v1815
      %v1875 = vrcp.pop %v1817
      %v1876 = vrcp.pop %v1819
      %v1877 = vrcp.pop %v1821
      %v1878 = vrcp.pop %v1823
      %v1879 = vrcp.pop %v1825
      %v1880 = vrcp.pop %v1827
      %v1881 = vrcp.pop %v1829
      %v1882 = vrcp.pop %v1831
      %v1883 = vrcp.pop %v1833
      %v1884 = vrcp.pop %v1835
      %v1885 = vrcp.pop %v1837
      %v1886 = vrcp.pop %v1839
      %v1887 = vrcp.pop %v1841
      %v1888 = vrcp.pop %v1843
      %v1889 = vrcp.pop %v1845
      %v1890 = vrcp.pop %v1847
      %v1891 = vrcp.pop %v1849
      %v1892 = vrcp.pop %v1851
      %v1893 = vrcp.pop %v1853
      %v1894 = vrcp.pop %v1855
      %v1895 = vrcp.pop %v1857
      %v1896 = vrcp.pop %v1859
      %v1897 = vrcp.pop %v1861
      %v1898 = vrcp.pop %v1863
      %v1899 = vrcp.pop %v1865
      %v1900 = vrcp.pop %v1867
      %v1901 = vrcp.pop %v1869
      %v1902 = vmul.f32 %v1743, %v1870
      %v1903 = vmul.f32 %v1745, %v1871
      %v1904 = vmul.f32 %v1747, %v1872
      %v1905 = vmul.f32 %v1749, %v1873
      %v1906 = vmul.f32 %v1751, %v1874
      %v1907 = vmul.f32 %v1753, %v1875
      %v1908 = vmul.f32 %v1755, %v1876
      %v1909 = vmul.f32 %v1757, %v1877
      %v1910 = vmul.f32 %v1759, %v1878
      %v1911 = vmul.f32 %v1761, %v1879
      %v1912 = vmul.f32 %v1763, %v1880
      %v1913 = vmul.f32 %v1765, %v1881
      %v1914 = vmul.f32 %v1767, %v1882
      %v1915 = vmul.f32 %v1769, %v1883
      %v1916 = vmul.f32 %v1771, %v1884
      %v1917 = vmul.f32 %v1773, %v1885
      %v1918 = vmul.f32 %v1775, %v1886
      %v1919 = vmul.f32 %v1777, %v1887
      %v1920 = vmul.f32 %v1779, %v1888
      %v1921 = vmul.f32 %v1781, %v1889
      %v1922 = vmul.f32 %v1783, %v1890
      %v1923 = vmul.f32 %v1785, %v1891
      %v1924 = vmul.f32 %v1787, %v1892
      %v1925 = vmul.f32 %v1789, %v1893
      %v1926 = vmul.f32 %v1791, %v1894
      %v1927 = vmul.f32 %v1793, %v1895
      %v1928 = vmul.f32 %v1795, %v1896
      %v1929 = vmul.f32 %v1797, %v1897
      %v1930 = vmul.f32 %v1799, %v1898
      %v1931 = vmul.f32 %v1801, %v1899
      %v1932 = vmul.f32 %v1803, %v1900
      %v1933 = vmul.f32 %v1805, %v1901
      %1934 = vst [vmem:[%s334] sm:$0xff] %v1902
      %1935 = vst [vmem:[%s334 + $0x8] sm:$0xff] %v1903
      %1936 = vst [vmem:[%s334 + $0x10] sm:$0xff] %v1904
      %1937 = vst [vmem:[%s334 + $0x18] sm:$0xff] %v1905
      %1938 = vst [vmem:[%s334 + $0x20] sm:$0xff] %v1906
      %1939 = vst [vmem:[%s334 + $0x28] sm:$0xff] %v1907
      %1940 = vst [vmem:[%s334 + $0x30] sm:$0xff] %v1908
      %1941 = vst [vmem:[%s334 + $0x38] sm:$0xff] %v1909
      %1942 = vst [vmem:[%s334 + $0x40] sm:$0xff] %v1910
      %1943 = vst [vmem:[%s334 + $0x48] sm:$0xff] %v1911
      %1944 = vst [vmem:[%s334 + $0x50] sm:$0xff] %v1912
      %1945 = vst [vmem:[%s334 + $0x58] sm:$0xff] %v1913
      %1946 = vst [vmem:[%s334 + $0x60] sm:$0xff] %v1914
      %1947 = vst [vmem:[%s334 + $0x68] sm:$0xff] %v1915
      %1948 = vst [vmem:[%s334 + $0x70] sm:$0xff] %v1916
      %1949 = vst [vmem:[%s334 + $0x78] sm:$0xff] %v1917
      %1950 = vst [vmem:[%s334 + $0x80] sm:$0xff] %v1918
      %1951 = vst [vmem:[%s334 + $0x88] sm:$0xff] %v1919
      %1952 = vst [vmem:[%s334 + $0x90] sm:$0xff] %v1920
      %1953 = vst [vmem:[%s334 + $0x98] sm:$0xff] %v1921
      %1954 = vst [vmem:[%s334 + $0xa0] sm:$0xff] %v1922
      %1955 = vst [vmem:[%s334 + $0xa8] sm:$0xff] %v1923
      %1956 = vst [vmem:[%s334 + $0xb0] sm:$0xff] %v1924
      %1957 = vst [vmem:[%s334 + $0xb8] sm:$0xff] %v1925
      %1958 = vst [vmem:[%s334 + $0xc0] sm:$0xff] %v1926
      %1959 = vst [vmem:[%s334 + $0xc8] sm:$0xff] %v1927
      %1960 = vst [vmem:[%s334 + $0xd0] sm:$0xff] %v1928
      %1961 = vst [vmem:[%s334 + $0xd8] sm:$0xff] %v1929
      %1962 = vst [vmem:[%s334 + $0xe0] sm:$0xff] %v1930
      %1963 = vst [vmem:[%s334 + $0xe8] sm:$0xff] %v1931
      %1964 = vst [vmem:[%s334 + $0xf0] sm:$0xff] %v1932
      %1965 = vst [vmem:[%s334 + $0xf8] sm:$0xff] %v1933
      %s1966 = smul.u32 32, %s20
      %p1967 = scmp.lt.s32.totalorder %s1966, 63
      %s1968 = scalar_select %p1967, %s1966, 63
      %s1969 = smul.addr %s1968, 8
      %s1970 = scalar_lea.vmem %s9, %s1969
      // Predicated region
      $region57: #{fnn_forward.1} parent=55 // pred_check
        %p1971 = pneg %p232
      $region58: #{fnn_forward.1} parent=55 // pred_check_branch
        %1973 = sbr.rel (%p1971) target = $region60
      $region59: #{fnn_forward.1} parent=55 // pred_region
        %s1974 = smul.u32 32, %s20
      $region60: #{fnn_forward.1} parent=55 // pred_fallthru
        _
    $region56: #{fnn_forward.1} parent=5 // pred_fallthru
      _
    %p1975 = scmp.le.s32.totalorder 2, %s15
    // Predicated region
    $region61: #{fnn_forward.1} parent=5 // pred_check
      %p1976 = pneg %p1975
    $region62: #{fnn_forward.1} parent=5 // pred_check_branch
      %1978 = sbr.rel (%p1976) target = $region64
    $region63: #{fnn_forward.1} parent=5 // pred_region
      %s1979 = ssub.s32 %s15, 2
      // Predicated region
      $region65: #{fnn_forward.1} parent=63 // pred_check
        %p1980 = pneg %p238
      $region66: #{fnn_forward.1} parent=63 // pred_check_branch
        %1982 = sbr.rel (%p1980) target = $region68
      $region67: #{fnn_forward.1} parent=63 // pred_region
        %s1983 = smul.u32 32, %s21
        %p1984 = scmp.lt.s32.totalorder %s1983, 63
        %s1985 = scalar_select %p1984, %s1983, 63
        %s1986 = smul.addr %s1985, 8
        %s1987 = scalar_lea.vmem %s9, %s1986
      $region68: #{fnn_forward.1} parent=63 // pred_fallthru
        _
    $region64: #{fnn_forward.1} parent=5 // pred_fallthru
      _
  $region6: #{fnn_forward.1} parent=0 // loop_footer
    %s19 = sadd.s32 1, %s15
  $region7: #{fnn_forward.1} parent=0 // loop_footer_branch
    %14 = sbr.rel target = $region3
  $region8: #{fnn_forward.1} parent=0 // loop_exit
    _

</llo_original>
